<compile_context>
chip_gen: v5e
topology: v5e:2x2
jax: 0.10.0
libtpu: 0.0.40
codegen_flags: <defaults>
</compile_context>

<pallas_src>
import math
from functools import partial

import jax
import jax.numpy as jnp
from jax.experimental import pallas as pl
from jax.experimental.pallas import tpu as pltpu


def _fused_attention_kernel(q_ref, k_ref, v_ref, g_ref,
                            wq_ref, wk_ref, wv_ref,
                            bq_ref, bk_ref, bv_ref,
                            wo_ref, bo_ref,
                            out_ref, attn_ref,
                            k_sc, v_sc, wq_sc,
                            *, n_heads, d_keys, d_values, scale, approx_recip):
    cdt = wq_ref.dtype                        # MXU operand dtype (bf16 fast / f32 check path)
    contract_last = (((1,), (1,)), ((), ()))  # dot_general: contract last dims of both operands

    # ---- per-batch init (l == 0): gated K/V projections + gated Q weights, resident over l ----
    @pl.when(pl.program_id(1) == 0)
    def _init_batch():
        g = g_ref[0]                                          # (H*dk, dm) gate for this batch
        wq_sc[...] = wq_ref[...] * g                          # gated Q weights, reused per tile
        wk = wk_ref[...] * g
        wv = wv_ref[...] * g
        k = jax.lax.dot_general(k_ref[0], wk, contract_last,
                                preferred_element_type=jnp.float32) + bk_ref[...]
        v = jax.lax.dot_general(v_ref[0], wv, contract_last,
                                preferred_element_type=jnp.float32) + bv_ref[...]
        k_sc[...] = k.astype(k_sc.dtype)                      # (S, H*dk)
        v_sc[...] = v.astype(v_sc.dtype)                      # (S, H*dv)

    # ---- Q projection for this (batch, L-tile): one stacked-heads matmul ----
    q = jax.lax.dot_general(q_ref[0], wq_sc[...], contract_last,
                            preferred_element_type=jnp.float32) + bq_ref[...]
    q = q.astype(cdt)                                         # (tq, H*dk)

    k_all = k_sc[...]                                         # (S, H*dk)
    v_all = v_sc[...]                                         # (S, H*dv)

    # ---- per-head softmax attention (softmax math in f32) ----
    outs = []
    for h in range(n_heads):
        qh = q[:, h * d_keys:(h + 1) * d_keys]
        kh = k_all[:, h * d_keys:(h + 1) * d_keys]
        vh = v_all[:, h * d_values:(h + 1) * d_values]
        s = jax.lax.dot_general(qh, kh, contract_last,
                                preferred_element_type=jnp.float32) * scale    # (tq, S)
        s = s - jnp.max(s, axis=-1, keepdims=True)
        p = jnp.exp(s)
        denom = jnp.sum(p, axis=-1, keepdims=True)
        if approx_recip:
            a = p * pl.reciprocal(denom, approx=True)         # EUP slot; frees VPU divides
        else:
            a = p / denom
        attn_ref[0, h] = a.astype(attn_ref.dtype)
        outs.append(jnp.dot(a.astype(cdt), vh, preferred_element_type=jnp.float32))

    out_flat = jnp.concatenate(outs, axis=-1).astype(cdt)     # (tq, H*dv), head-major

    # ---- fused output projection: (tq, H*dv) @ Wo^T + bo, lane-dense (dm) store ----
    out = jax.lax.dot_general(out_flat, wo_ref[...], contract_last,
                              preferred_element_type=jnp.float32) + bo_ref[...]
    out_ref[0] = out.astype(out_ref.dtype)


def _pick_block_l(L):
    for t in (512, 256, 128):
        if L % t == 0:
            return t
    return L


def attention_layer_forward(queries, keys, values, gate_scores, params, *,
                            compute_dtype=jnp.bfloat16,
                            attn_dtype=jnp.float32,
                            block_l=None):
    """params = (Wq, bq, Wk, bk, Wv, bv, Wo, bo)
       Wq/Wk/Wv: (H, dk, d_model), bq/bk/bv: (H, 1, dk),
       Wo: (d_model, H*dv), bo: (1, d_model)."""
    Wq, bq, Wk, bk, Wv, bv, Wo, bo = params
    B, L, dm = queries.shape
    _, S, _ = keys.shape
    H, dk, _ = Wq.shape
    dv = Wv.shape[1]
    assert dk == dv, "dynamic gating path requires d_keys == d_values (as in the PyTorch module)"
    scale = 1.0 / math.sqrt(dk)

    tq = _pick_block_l(L) if block_l is None else block_l
    n_lt = L // tq
    assert n_lt * tq == L, "L must be divisible by the L-tile size"

    cdt = compute_dtype
    # Stack heads; cast MXU operands to the compute dtype. Biases stay f32 (added to the
    # f32 accumulator).
    qx = queries.astype(cdt)
    kx = keys.astype(cdt)
    vx = values.astype(cdt)
    gate_f = gate_scores.reshape(B, H * dk, dm).astype(cdt)
    Wq_f = Wq.reshape(H * dk, dm).astype(cdt)
    Wk_f = Wk.reshape(H * dk, dm).astype(cdt)
    Wv_f = Wv.reshape(H * dv, dm).astype(cdt)
    bq_f = bq.reshape(1, H * dk).astype(jnp.float32)
    bk_f = bk.reshape(1, H * dk).astype(jnp.float32)
    bv_f = bv.reshape(1, H * dv).astype(jnp.float32)
    Wo_c = Wo.astype(cdt)                  # (dm, H*dv)
    bo_f = bo.astype(jnp.float32)          # (1, dm)

    kernel = partial(_fused_attention_kernel,
                     n_heads=H, d_keys=dk, d_values=dv, scale=scale,
                     approx_recip=(cdt == jnp.bfloat16))

    out, attn = pl.pallas_call(
        kernel,
        out_shape=(jax.ShapeDtypeStruct((B, L, dm), jnp.float32),
                   jax.ShapeDtypeStruct((B, H, L, S), attn_dtype)),
        grid_spec=pltpu.PrefetchScalarGridSpec(
            num_scalar_prefetch=0,
            grid=(B, n_lt),
            in_specs=[
                pl.BlockSpec((1, tq, dm), lambda b, l: (b, l, 0)),        # queries tile
                pl.BlockSpec((1, S, dm), lambda b, l: (b, 0, 0)),         # keys (resident over l)
                pl.BlockSpec((1, S, dm), lambda b, l: (b, 0, 0)),         # values (resident over l)
                pl.BlockSpec((1, H * dk, dm), lambda b, l: (b, 0, 0)),    # gate (heads stacked)
                pl.BlockSpec((H * dk, dm), lambda b, l: (0, 0)),          # Wq (heads stacked)
                pl.BlockSpec((H * dk, dm), lambda b, l: (0, 0)),          # Wk
                pl.BlockSpec((H * dv, dm), lambda b, l: (0, 0)),          # Wv
                pl.BlockSpec((1, H * dk), lambda b, l: (0, 0)),           # bq
                pl.BlockSpec((1, H * dk), lambda b, l: (0, 0)),           # bk
                pl.BlockSpec((1, H * dv), lambda b, l: (0, 0)),           # bv
                pl.BlockSpec((dm, H * dv), lambda b, l: (0, 0)),          # Wo
                pl.BlockSpec((1, dm), lambda b, l: (0, 0)),               # bo
            ],
            out_specs=[
                pl.BlockSpec((1, tq, dm), lambda b, l: (b, l, 0)),        # out (lane-dense dm)
                pl.BlockSpec((1, H, tq, S), lambda b, l: (b, 0, l, 0)),   # attn
            ],
            scratch_shapes=[
                pltpu.VMEM((S, H * dk), cdt),   # projected K, resident across L tiles
                pltpu.VMEM((S, H * dv), cdt),   # projected V, resident across L tiles
                pltpu.VMEM((H * dk, dm), cdt),  # gated Q weights, resident across L tiles
            ],
        ),
        compiler_params=pltpu.CompilerParams(
            # batch axis parallel (v7x dual-TC sharding); L-tile axis sequential so the
            # per-batch scratch computed at l == 0 stays valid across that batch's tiles.
            dimension_semantics=("parallel", "arbitrary"),
            # Explicit scoped-VMEM budget, safe on v5e/v6e/v7x at these tile sizes.
            # TODO(synk): re-derive block_l and this limit for v7x (64 MiB physical VMEM)
            # at large L, S.
            vmem_limit_bytes=32 * 1024 * 1024,
        ),
    )(qx, kx, vx, gate_f, Wq_f, Wk_f, Wv_f, bq_f, bk_f, bv_f, Wo_c, bo_f)

    return out, attn


def _reference(queries, keys, values, gate_scores, params):
    # Pure-JAX reference mirroring the PyTorch forward (dynamic=True, FullAttention), in f32.
    Wq, bq, Wk, bk, Wv, bv, Wo, bo = params
    H, dk, dm = Wq.shape
    dv = Wv.shape[1]
    scale = 1.0 / math.sqrt(dk)
    hp = jax.lax.Precision.HIGHEST

    def proj(x, W, b):
        Wg = gate_scores * W[None]                                        # (B, H, d, dm)
        y = jnp.einsum('btd,bhkd->bthk', x, Wg, precision=hp)
        return y + b.reshape(1, 1, H, -1)

    Q = proj(queries, Wq, bq)     # (B, L, H, dk)
    K = proj(keys, Wk, bk)        # (B, S, H, dk)
    V = proj(values, Wv, bv)      # (B, S, H, dv)
    scores = jnp.einsum('blhe,bshe->bhls', Q, K, precision=hp) * scale
    A = jax.nn.softmax(scores, axis=-1)
    O = jnp.einsum('bhls,bshd->blhd', A, V, precision=hp)
    B_, L_ = Q.shape[:2]
    out = jnp.einsum('blf,df->bld', O.reshape(B_, L_, H * dv), Wo, precision=hp) + bo
    return out, A


if __name__ == "__main__":
    B, L, S = 2, 8, 8
    d_model, H = 32, 4
    dk = dv = d_model // H

    key = jax.random.PRNGKey(0)
    ks = jax.random.split(key, 12)
    queries = jax.random.normal(ks[0], (B, L, d_model), jnp.float32)
    keys_ = jax.random.normal(ks[1], (B, S, d_model), jnp.float32)
    values = jax.random.normal(ks[2], (B, S, d_model), jnp.float32)
    gate_scores = jax.random.uniform(ks[3], (B, H, dk, d_model), jnp.float32)

    # Deterministic "nn.Linear"-style parameter init (uniform(-1/sqrt(fan_in), +)).
    s = 1.0 / math.sqrt(d_model)
    Wq = jax.random.uniform(ks[4], (H, dk, d_model), jnp.float32, -s, s)
    bq = jax.random.uniform(ks[5], (H, 1, dk), jnp.float32, -s, s)
    Wk = jax.random.uniform(ks[6], (H, dk, d_model), jnp.float32, -s, s)
    bk = jax.random.uniform(ks[7], (H, 1, dk), jnp.float32, -s, s)
    Wv = jax.random.uniform(ks[8], (H, dk, d_model), jnp.float32, -s, s)
    bv = jax.random.uniform(ks[9], (H, 1, dk), jnp.float32, -s, s)
    so = 1.0 / math.sqrt(H * dv)
    Wo = jax.random.uniform(ks[10], (d_model, H * dv), jnp.float32, -so, so)
    bo = jax.random.uniform(ks[11], (1, d_model), jnp.float32, -so, so)
    params = (Wq, bq, Wk, bk, Wv, bv, Wo, bo)

    out_ref, attn_ref_ = _reference(queries, keys_, values, gate_scores, params)

    # 1) f32-operand path — must match the f32 reference tightly.
    out32, attn32 = attention_layer_forward(
        queries, keys_, values, gate_scores, params,
        compute_dtype=jnp.float32, attn_dtype=jnp.float32)
    out32, attn32 = jax.block_until_ready((out32, attn32))
    assert jnp.allclose(out32, out_ref, atol=1e-3, rtol=1e-3), "f32 output mismatch"
    assert jnp.allclose(attn32, attn_ref_, atol=1e-3, rtol=1e-3), "f32 attention mismatch"

    # 2) Fast path: bf16 MXU operands (f32 accumulation / f32 softmax), bf16 attn writeback.
    out_bf, attn_bf = attention_layer_forward(
        queries, keys_, values, gate_scores, params,
        compute_dtype=jnp.bfloat16, attn_dtype=jnp.bfloat16)
    out_bf, attn_bf = jax.block_until_ready((out_bf, attn_bf))
    assert jnp.allclose(out_bf, out_ref, atol=6e-2, rtol=6e-2), "bf16 output mismatch"
    assert jnp.allclose(attn_bf.astype(jnp.float32), attn_ref_,
                        atol=6e-2, rtol=6e-2), "bf16 attention mismatch"

    print("KERNEL_OK")
</pallas_src>

<mosaic_0001>
module attributes {stable_mosaic.version = 11 : i64} {
  func.func @_fused_attention_kernel(%arg0: i32, %arg1: i32, %arg2: memref<1x8x32xf32, #tpu.memory_space<vmem>>, %arg3: memref<1x8x32xf32, #tpu.memory_space<vmem>>, %arg4: memref<1x8x32xf32, #tpu.memory_space<vmem>>, %arg5: memref<1x32x32xf32, #tpu.memory_space<vmem>>, %arg6: memref<32x32xf32, #tpu.memory_space<vmem>>, %arg7: memref<32x32xf32, #tpu.memory_space<vmem>>, %arg8: memref<32x32xf32, #tpu.memory_space<vmem>>, %arg9: memref<1x32xf32, #tpu.memory_space<vmem>>, %arg10: memref<1x32xf32, #tpu.memory_space<vmem>>, %arg11: memref<1x32xf32, #tpu.memory_space<vmem>>, %arg12: memref<32x32xf32, #tpu.memory_space<vmem>>, %arg13: memref<1x32xf32, #tpu.memory_space<vmem>>, %arg14: memref<1x8x32xf32, #tpu.memory_space<vmem>>, %arg15: memref<1x4x8x8xf32, #tpu.memory_space<vmem>>, %arg16: memref<8x32xf32, #tpu.memory_space<vmem>>, %arg17: memref<8x32xf32, #tpu.memory_space<vmem>>, %arg18: memref<32x32xf32, #tpu.memory_space<vmem>>) attributes {dimension_semantics = [#tpu.dimension_semantics<parallel>, #tpu.dimension_semantics<arbitrary>], iteration_bounds = array<i64: 2, 1>, scalar_prefetch = 0 : i64, scratch_operands = 3 : i64, tpu.core_type = #tpu.core_type<tc>, window_params = [{transform_indices = @transform_0, window_bounds = array<i64: 1, 8, 32>}, {transform_indices = @transform_1, window_bounds = array<i64: 1, 8, 32>}, {transform_indices = @transform_2, window_bounds = array<i64: 1, 8, 32>}, {transform_indices = @transform_3, window_bounds = array<i64: 1, 32, 32>}, {pipeline_mode = #tpu.pipeline_mode<synchronous>, transform_indices = @transform_4, window_bounds = array<i64: 32, 32>}, {pipeline_mode = #tpu.pipeline_mode<synchronous>, transform_indices = @transform_5, window_bounds = array<i64: 32, 32>}, {pipeline_mode = #tpu.pipeline_mode<synchronous>, transform_indices = @transform_6, window_bounds = array<i64: 32, 32>}, {pipeline_mode = #tpu.pipeline_mode<synchronous>, transform_indices = @transform_7, window_bounds = array<i64: 1, 32>}, {pipeline_mode = #tpu.pipeline_mode<synchronous>, transform_indices = @transform_8, window_bounds = array<i64: 1, 32>}, {pipeline_mode = #tpu.pipeline_mode<synchronous>, transform_indices = @transform_9, window_bounds = array<i64: 1, 32>}, {pipeline_mode = #tpu.pipeline_mode<synchronous>, transform_indices = @transform_10, window_bounds = array<i64: 32, 32>}, {pipeline_mode = #tpu.pipeline_mode<synchronous>, transform_indices = @transform_11, window_bounds = array<i64: 1, 32>}, {transform_indices = @transform_12, window_bounds = array<i64: 1, 8, 32>}, {transform_indices = @transform_13, window_bounds = array<i64: 1, 4, 8, 8>}]} {
    %c0_i32 = arith.constant 0 : i32
    %0 = arith.cmpi eq, %arg1, %c0_i32 : i32
    %1 = arith.extui %0 : i1 to i32
    %c0_i32_0 = arith.constant 0 : i32
    %2 = arith.cmpi ne, %1, %c0_i32_0 : i32
    scf.if %2 {
      %c0_52 = arith.constant 0 : index
      %c0_53 = arith.constant 0 : index
      %c0_54 = arith.constant 0 : index
      %97 = vector.load %arg5[%c0_52, %c0_53, %c0_54] : memref<1x32x32xf32, #tpu.memory_space<vmem>>, vector<1x32x32xf32>
      %98 = vector.shape_cast %97 : vector<1x32x32xf32> to vector<32x32xf32>
      %c0_55 = arith.constant 0 : index
      %c0_56 = arith.constant 0 : index
      %99 = vector.load %arg6[%c0_55, %c0_56] : memref<32x32xf32, #tpu.memory_space<vmem>>, vector<32x32xf32>
      %100 = arith.mulf %99, %98 : vector<32x32xf32>
      %c0_57 = arith.constant 0 : index
      %c0_58 = arith.constant 0 : index
      %101 = vector.load %arg18[%c0_57, %c0_58] : memref<32x32xf32, #tpu.memory_space<vmem>>, vector<32x32xf32>
      tpu.vector_store %arg18[%c0_57, %c0_58], %100 {strides = array<i32>} : memref<32x32xf32, #tpu.memory_space<vmem>>, vector<32x32xf32>,
      %c0_59 = arith.constant 0 : index
      %c0_60 = arith.constant 0 : index
      %102 = vector.load %arg7[%c0_59, %c0_60] : memref<32x32xf32, #tpu.memory_space<vmem>>, vector<32x32xf32>
      %103 = arith.mulf %102, %98 : vector<32x32xf32>
      %c0_61 = arith.constant 0 : index
      %c0_62 = arith.constant 0 : index
      %104 = vector.load %arg8[%c0_61, %c0_62] : memref<32x32xf32, #tpu.memory_space<vmem>>, vector<32x32xf32>
      %105 = arith.mulf %104, %98 : vector<32x32xf32>
      %c0_63 = arith.constant 0 : index
      %c0_64 = arith.constant 0 : index
      %c0_65 = arith.constant 0 : index
      %106 = vector.load %arg3[%c0_63, %c0_64, %c0_65] : memref<1x8x32xf32, #tpu.memory_space<vmem>>, vector<1x8x32xf32>
      %107 = vector.shape_cast %106 : vector<1x8x32xf32> to vector<8x32xf32>
      %cst_66 = arith.constant dense<0.000000e+00> : vector<8x32xf32>
      %108 = tpu.matmul %107, %103, %cst_66 {dimension_numbers = #tpu.dot_dimension_numbers<[1], [1], [0], [0], [0, 0, 1, 0], [], []>} : vector<8x32xf32>, vector<32x32xf32>, vector<8x32xf32> -> vector<8x32xf32>
      %c0_67 = arith.constant 0 : index
      %c0_68 = arith.constant 0 : index
      %109 = vector.load %arg10[%c0_67, %c0_68] : memref<1x32xf32, #tpu.memory_space<vmem>>, vector<1x32xf32>
      %110 = vector.broadcast %109 : vector<1x32xf32> to vector<8x32xf32>
      %111 = arith.addf %108, %110 : vector<8x32xf32>
      %c0_69 = arith.constant 0 : index
      %c0_70 = arith.constant 0 : index
      %c0_71 = arith.constant 0 : index
      %112 = vector.load %arg4[%c0_69, %c0_70, %c0_71] : memref<1x8x32xf32, #tpu.memory_space<vmem>>, vector<1x8x32xf32>
      %113 = vector.shape_cast %112 : vector<1x8x32xf32> to vector<8x32xf32>
      %cst_72 = arith.constant dense<0.000000e+00> : vector<8x32xf32>
      %114 = tpu.matmul %113, %105, %cst_72 {dimension_numbers = #tpu.dot_dimension_numbers<[1], [1], [0], [0], [0, 0, 1, 0], [], []>} : vector<8x32xf32>, vector<32x32xf32>, vector<8x32xf32> -> vector<8x32xf32>
      %c0_73 = arith.constant 0 : index
      %c0_74 = arith.constant 0 : index
      %115 = vector.load %arg11[%c0_73, %c0_74] : memref<1x32xf32, #tpu.memory_space<vmem>>, vector<1x32xf32>
      %116 = vector.broadcast %115 : vector<1x32xf32> to vector<8x32xf32>
      %117 = arith.addf %114, %116 : vector<8x32xf32>
      %c0_75 = arith.constant 0 : index
      %c0_76 = arith.constant 0 : index
      %118 = vector.load %arg16[%c0_75, %c0_76] : memref<8x32xf32, #tpu.memory_space<vmem>>, vector<8x32xf32>
      tpu.vector_store %arg16[%c0_75, %c0_76], %111 {strides = array<i32>} : memref<8x32xf32, #tpu.memory_space<vmem>>, vector<8x32xf32>,
      %c0_77 = arith.constant 0 : index
      %c0_78 = arith.constant 0 : index
      %119 = vector.load %arg17[%c0_77, %c0_78] : memref<8x32xf32, #tpu.memory_space<vmem>>, vector<8x32xf32>
      tpu.vector_store %arg17[%c0_77, %c0_78], %117 {strides = array<i32>} : memref<8x32xf32, #tpu.memory_space<vmem>>, vector<8x32xf32>,
    } else {
    }
    %c0 = arith.constant 0 : index
    %c0_1 = arith.constant 0 : index
    %c0_2 = arith.constant 0 : index
    %3 = vector.load %arg2[%c0, %c0_1, %c0_2] : memref<1x8x32xf32, #tpu.memory_space<vmem>>, vector<1x8x32xf32>
    %4 = vector.shape_cast %3 : vector<1x8x32xf32> to vector<8x32xf32>
    %c0_3 = arith.constant 0 : index
    %c0_4 = arith.constant 0 : index
    %5 = vector.load %arg18[%c0_3, %c0_4] : memref<32x32xf32, #tpu.memory_space<vmem>>, vector<32x32xf32>
    %cst = arith.constant dense<0.000000e+00> : vector<8x32xf32>
    %6 = tpu.matmul %4, %5, %cst {dimension_numbers = #tpu.dot_dimension_numbers<[1], [1], [0], [0], [0, 0, 1, 0], [], []>} : vector<8x32xf32>, vector<32x32xf32>, vector<8x32xf32> -> vector<8x32xf32>
    %c0_5 = arith.constant 0 : index
    %c0_6 = arith.constant 0 : index
    %7 = vector.load %arg9[%c0_5, %c0_6] : memref<1x32xf32, #tpu.memory_space<vmem>>, vector<1x32xf32>
    %8 = vector.broadcast %7 : vector<1x32xf32> to vector<8x32xf32>
    %9 = arith.addf %6, %8 : vector<8x32xf32>
    %c0_7 = arith.constant 0 : index
    %c0_8 = arith.constant 0 : index
    %10 = vector.load %arg16[%c0_7, %c0_8] : memref<8x32xf32, #tpu.memory_space<vmem>>, vector<8x32xf32>
    %c0_9 = arith.constant 0 : index
    %c0_10 = arith.constant 0 : index
    %11 = vector.load %arg17[%c0_9, %c0_10] : memref<8x32xf32, #tpu.memory_space<vmem>>, vector<8x32xf32>
    %12 = vector.extract_strided_slice %9 {offsets = [0, 0], sizes = [8, 8], strides = [1, 1]} : vector<8x32xf32> to vector<8x8xf32>
    %13 = vector.extract_strided_slice %10 {offsets = [0, 0], sizes = [8, 8], strides = [1, 1]} : vector<8x32xf32> to vector<8x8xf32>
    %14 = vector.extract_strided_slice %11 {offsets = [0, 0], sizes = [8, 8], strides = [1, 1]} : vector<8x32xf32> to vector<8x8xf32>
    %cst_11 = arith.constant dense<0.000000e+00> : vector<8x8xf32>
    %15 = tpu.matmul %12, %13, %cst_11 {dimension_numbers = #tpu.dot_dimension_numbers<[1], [1], [0], [0], [0, 0, 1, 0], [], []>} : vector<8x8xf32>, vector<8x8xf32>, vector<8x8xf32> -> vector<8x8xf32>
    %cst_12 = arith.constant 0.353553385 : f32
    %16 = vector.broadcast %cst_12 : f32 to vector<8x8xf32>
    %17 = arith.mulf %15, %16 : vector<8x8xf32>
    %cst_13 = arith.constant dense<0xFF800000> : vector<8xf32>
    %18 = vector.multi_reduction <maximumf>, %17, %cst_13 [1] : vector<8x8xf32> to vector<8xf32>
    %19 = vector.shape_cast %18 : vector<8xf32> to vector<8x1xf32>
    %20 = vector.broadcast %19 : vector<8x1xf32> to vector<8x8xf32>
    %21 = arith.subf %17, %20 : vector<8x8xf32>
    %22 = math.exp %21 : vector<8x8xf32>
    %cst_14 = arith.constant dense<0.000000e+00> : vector<8xf32>
    %23 = vector.multi_reduction <add>, %22, %cst_14 [1] : vector<8x8xf32> to vector<8xf32>
    %24 = vector.shape_cast %23 : vector<8xf32> to vector<8x1xf32>
    %25 = vector.broadcast %24 : vector<8x1xf32> to vector<8x8xf32>
    %26 = arith.divf %22, %25 : vector<8x8xf32>
    %c0_15 = arith.constant 0 : index
    %c0_16 = arith.constant 0 : index
    %c0_17 = arith.constant 0 : index
    %c0_18 = arith.constant 0 : index
    %27 = vector.load %arg15[%c0_15, %c0_16, %c0_17, %c0_18] : memref<1x4x8x8xf32, #tpu.memory_space<vmem>>, vector<1x1x8x8xf32>
    %28 = vector.shape_cast %27 : vector<1x1x8x8xf32> to vector<8x8xf32>
    %29 = vector.shape_cast %26 : vector<8x8xf32> to vector<1x1x8x8xf32>
    tpu.vector_store %arg15[%c0_15, %c0_16, %c0_17, %c0_18], %29 {strides = array<i32>} : memref<1x4x8x8xf32, #tpu.memory_space<vmem>>, vector<1x1x8x8xf32>,
    %cst_19 = arith.constant dense<0.000000e+00> : vector<8x8xf32>
    %30 = tpu.matmul %26, %14, %cst_19 {dimension_numbers = #tpu.dot_dimension_numbers<[1], [0], [0], [1], [0, 0, 1, 1], [], []>} : vector<8x8xf32>, vector<8x8xf32>, vector<8x8xf32> -> vector<8x8xf32>
    %31 = vector.extract_strided_slice %9 {offsets = [0, 8], sizes = [8, 8], strides = [1, 1]} : vector<8x32xf32> to vector<8x8xf32>
    %32 = vector.extract_strided_slice %10 {offsets = [0, 8], sizes = [8, 8], strides = [1, 1]} : vector<8x32xf32> to vector<8x8xf32>
    %33 = vector.extract_strided_slice %11 {offsets = [0, 8], sizes = [8, 8], strides = [1, 1]} : vector<8x32xf32> to vector<8x8xf32>
    %cst_20 = arith.constant dense<0.000000e+00> : vector<8x8xf32>
    %34 = tpu.matmul %31, %32, %cst_20 {dimension_numbers = #tpu.dot_dimension_numbers<[1], [1], [0], [0], [0, 0, 1, 0], [], []>} : vector<8x8xf32>, vector<8x8xf32>, vector<8x8xf32> -> vector<8x8xf32>
    %cst_21 = arith.constant 0.353553385 : f32
    %35 = vector.broadcast %cst_21 : f32 to vector<8x8xf32>
    %36 = arith.mulf %34, %35 : vector<8x8xf32>
    %cst_22 = arith.constant dense<0xFF800000> : vector<8xf32>
    %37 = vector.multi_reduction <maximumf>, %36, %cst_22 [1] : vector<8x8xf32> to vector<8xf32>
    %38 = vector.shape_cast %37 : vector<8xf32> to vector<8x1xf32>
    %39 = vector.broadcast %38 : vector<8x1xf32> to vector<8x8xf32>
    %40 = arith.subf %36, %39 : vector<8x8xf32>
    %41 = math.exp %40 : vector<8x8xf32>
    %cst_23 = arith.constant dense<0.000000e+00> : vector<8xf32>
    %42 = vector.multi_reduction <add>, %41, %cst_23 [1] : vector<8x8xf32> to vector<8xf32>
    %43 = vector.shape_cast %42 : vector<8xf32> to vector<8x1xf32>
    %44 = vector.broadcast %43 : vector<8x1xf32> to vector<8x8xf32>
    %45 = arith.divf %41, %44 : vector<8x8xf32>
    %c0_24 = arith.constant 0 : index
    %c1 = arith.constant 1 : index
    %c0_25 = arith.constant 0 : index
    %c0_26 = arith.constant 0 : index
    %46 = vector.load %arg15[%c0_24, %c1, %c0_25, %c0_26] : memref<1x4x8x8xf32, #tpu.memory_space<vmem>>, vector<1x1x8x8xf32>
    %47 = vector.shape_cast %46 : vector<1x1x8x8xf32> to vector<8x8xf32>
    %48 = vector.shape_cast %45 : vector<8x8xf32> to vector<1x1x8x8xf32>
    tpu.vector_store %arg15[%c0_24, %c1, %c0_25, %c0_26], %48 {strides = array<i32>} : memref<1x4x8x8xf32, #tpu.memory_space<vmem>>, vector<1x1x8x8xf32>,
    %cst_27 = arith.constant dense<0.000000e+00> : vector<8x8xf32>
    %49 = tpu.matmul %45, %33, %cst_27 {dimension_numbers = #tpu.dot_dimension_numbers<[1], [0], [0], [1], [0, 0, 1, 1], [], []>} : vector<8x8xf32>, vector<8x8xf32>, vector<8x8xf32> -> vector<8x8xf32>
    %50 = vector.extract_strided_slice %9 {offsets = [0, 16], sizes = [8, 8], strides = [1, 1]} : vector<8x32xf32> to vector<8x8xf32>
    %51 = vector.extract_strided_slice %10 {offsets = [0, 16], sizes = [8, 8], strides = [1, 1]} : vector<8x32xf32> to vector<8x8xf32>
    %52 = vector.extract_strided_slice %11 {offsets = [0, 16], sizes = [8, 8], strides = [1, 1]} : vector<8x32xf32> to vector<8x8xf32>
    %cst_28 = arith.constant dense<0.000000e+00> : vector<8x8xf32>
    %53 = tpu.matmul %50, %51, %cst_28 {dimension_numbers = #tpu.dot_dimension_numbers<[1], [1], [0], [0], [0, 0, 1, 0], [], []>} : vector<8x8xf32>, vector<8x8xf32>, vector<8x8xf32> -> vector<8x8xf32>
    %cst_29 = arith.constant 0.353553385 : f32
    %54 = vector.broadcast %cst_29 : f32 to vector<8x8xf32>
    %55 = arith.mulf %53, %54 : vector<8x8xf32>
    %cst_30 = arith.constant dense<0xFF800000> : vector<8xf32>
    %56 = vector.multi_reduction <maximumf>, %55, %cst_30 [1] : vector<8x8xf32> to vector<8xf32>
    %57 = vector.shape_cast %56 : vector<8xf32> to vector<8x1xf32>
    %58 = vector.broadcast %57 : vector<8x1xf32> to vector<8x8xf32>
    %59 = arith.subf %55, %58 : vector<8x8xf32>
    %60 = math.exp %59 : vector<8x8xf32>
    %cst_31 = arith.constant dense<0.000000e+00> : vector<8xf32>
    %61 = vector.multi_reduction <add>, %60, %cst_31 [1] : vector<8x8xf32> to vector<8xf32>
    %62 = vector.shape_cast %61 : vector<8xf32> to vector<8x1xf32>
    %63 = vector.broadcast %62 : vector<8x1xf32> to vector<8x8xf32>
    %64 = arith.divf %60, %63 : vector<8x8xf32>
    %c0_32 = arith.constant 0 : index
    %c2 = arith.constant 2 : index
    %c0_33 = arith.constant 0 : index
    %c0_34 = arith.constant 0 : index
    %65 = vector.load %arg15[%c0_32, %c2, %c0_33, %c0_34] : memref<1x4x8x8xf32, #tpu.memory_space<vmem>>, vector<1x1x8x8xf32>
    %66 = vector.shape_cast %65 : vector<1x1x8x8xf32> to vector<8x8xf32>
    %67 = vector.shape_cast %64 : vector<8x8xf32> to vector<1x1x8x8xf32>
    tpu.vector_store %arg15[%c0_32, %c2, %c0_33, %c0_34], %67 {strides = array<i32>} : memref<1x4x8x8xf32, #tpu.memory_space<vmem>>, vector<1x1x8x8xf32>,
    %cst_35 = arith.constant dense<0.000000e+00> : vector<8x8xf32>
    %68 = tpu.matmul %64, %52, %cst_35 {dimension_numbers = #tpu.dot_dimension_numbers<[1], [0], [0], [1], [0, 0, 1, 1], [], []>} : vector<8x8xf32>, vector<8x8xf32>, vector<8x8xf32> -> vector<8x8xf32>
    %69 = vector.extract_strided_slice %9 {offsets = [0, 24], sizes = [8, 8], strides = [1, 1]} : vector<8x32xf32> to vector<8x8xf32>
    %70 = vector.extract_strided_slice %10 {offsets = [0, 24], sizes = [8, 8], strides = [1, 1]} : vector<8x32xf32> to vector<8x8xf32>
    %71 = vector.extract_strided_slice %11 {offsets = [0, 24], sizes = [8, 8], strides = [1, 1]} : vector<8x32xf32> to vector<8x8xf32>
    %cst_36 = arith.constant dense<0.000000e+00> : vector<8x8xf32>
    %72 = tpu.matmul %69, %70, %cst_36 {dimension_numbers = #tpu.dot_dimension_numbers<[1], [1], [0], [0], [0, 0, 1, 0], [], []>} : vector<8x8xf32>, vector<8x8xf32>, vector<8x8xf32> -> vector<8x8xf32>
    %cst_37 = arith.constant 0.353553385 : f32
    %73 = vector.broadcast %cst_37 : f32 to vector<8x8xf32>
    %74 = arith.mulf %72, %73 : vector<8x8xf32>
    %cst_38 = arith.constant dense<0xFF800000> : vector<8xf32>
    %75 = vector.multi_reduction <maximumf>, %74, %cst_38 [1] : vector<8x8xf32> to vector<8xf32>
    %76 = vector.shape_cast %75 : vector<8xf32> to vector<8x1xf32>
    %77 = vector.broadcast %76 : vector<8x1xf32> to vector<8x8xf32>
    %78 = arith.subf %74, %77 : vector<8x8xf32>
    %79 = math.exp %78 : vector<8x8xf32>
    %cst_39 = arith.constant dense<0.000000e+00> : vector<8xf32>
    %80 = vector.multi_reduction <add>, %79, %cst_39 [1] : vector<8x8xf32> to vector<8xf32>
    %81 = vector.shape_cast %80 : vector<8xf32> to vector<8x1xf32>
    %82 = vector.broadcast %81 : vector<8x1xf32> to vector<8x8xf32>
    %83 = arith.divf %79, %82 : vector<8x8xf32>
    %c0_40 = arith.constant 0 : index
    %c3 = arith.constant 3 : index
    %c0_41 = arith.constant 0 : index
    %c0_42 = arith.constant 0 : index
    %84 = vector.load %arg15[%c0_40, %c3, %c0_41, %c0_42] : memref<1x4x8x8xf32, #tpu.memory_space<vmem>>, vector<1x1x8x8xf32>
    %85 = vector.shape_cast %84 : vector<1x1x8x8xf32> to vector<8x8xf32>
    %86 = vector.shape_cast %83 : vector<8x8xf32> to vector<1x1x8x8xf32>
    tpu.vector_store %arg15[%c0_40, %c3, %c0_41, %c0_42], %86 {strides = array<i32>} : memref<1x4x8x8xf32, #tpu.memory_space<vmem>>, vector<1x1x8x8xf32>,
    %cst_43 = arith.constant dense<0.000000e+00> : vector<8x8xf32>
    %87 = tpu.matmul %83, %71, %cst_43 {dimension_numbers = #tpu.dot_dimension_numbers<[1], [0], [0], [1], [0, 0, 1, 1], [], []>} : vector<8x8xf32>, vector<8x8xf32>, vector<8x8xf32> -> vector<8x8xf32>
    %88 = tpu.concatenate %30, %49, %68, %87 in 1 : vector<8x8xf32>, vector<8x8xf32>, vector<8x8xf32>, vector<8x8xf32> -> vector<8x32xf32>
    %c0_44 = arith.constant 0 : index
    %c0_45 = arith.constant 0 : index
    %89 = vector.load %arg12[%c0_44, %c0_45] : memref<32x32xf32, #tpu.memory_space<vmem>>, vector<32x32xf32>
    %cst_46 = arith.constant dense<0.000000e+00> : vector<8x32xf32>
    %90 = tpu.matmul %88, %89, %cst_46 {dimension_numbers = #tpu.dot_dimension_numbers<[1], [1], [0], [0], [0, 0, 1, 0], [], []>} : vector<8x32xf32>, vector<32x32xf32>, vector<8x32xf32> -> vector<8x32xf32>
    %c0_47 = arith.constant 0 : index
    %c0_48 = arith.constant 0 : index
    %91 = vector.load %arg13[%c0_47, %c0_48] : memref<1x32xf32, #tpu.memory_space<vmem>>, vector<1x32xf32>
    %92 = vector.broadcast %91 : vector<1x32xf32> to vector<8x32xf32>
    %93 = arith.addf %90, %92 : vector<8x32xf32>
    %c0_49 = arith.constant 0 : index
    %c0_50 = arith.constant 0 : index
    %c0_51 = arith.constant 0 : index
    %94 = vector.load %arg14[%c0_49, %c0_50, %c0_51] : memref<1x8x32xf32, #tpu.memory_space<vmem>>, vector<1x8x32xf32>
    %95 = vector.shape_cast %94 : vector<1x8x32xf32> to vector<8x32xf32>
    %96 = vector.shape_cast %93 : vector<8x32xf32> to vector<1x8x32xf32>
    tpu.vector_store %arg14[%c0_49, %c0_50, %c0_51], %96 {strides = array<i32>} : memref<1x8x32xf32, #tpu.memory_space<vmem>>, vector<1x8x32xf32>,
    return
  }
  func.func @transform_0(%arg0: i32, %arg1: i32) -> (i32, i32, i32) {
    %c0_i32 = arith.constant 0 : i32
    %c0_i32_0 = arith.constant 0 : i32
    return %arg0, %arg1, %c0_i32 : i32, i32, i32
  }
  func.func @transform_1(%arg0: i32, %arg1: i32) -> (i32, i32, i32) {
    %c0_i32 = arith.constant 0 : i32
    %c0_i32_0 = arith.constant 0 : i32
    %c0_i32_1 = arith.constant 0 : i32
    return %arg0, %c0_i32, %c0_i32_0 : i32, i32, i32
  }
  func.func @transform_2(%arg0: i32, %arg1: i32) -> (i32, i32, i32) {
    %c0_i32 = arith.constant 0 : i32
    %c0_i32_0 = arith.constant 0 : i32
    %c0_i32_1 = arith.constant 0 : i32
    return %arg0, %c0_i32, %c0_i32_0 : i32, i32, i32
  }
  func.func @transform_3(%arg0: i32, %arg1: i32) -> (i32, i32, i32) {
    %c0_i32 = arith.constant 0 : i32
    %c0_i32_0 = arith.constant 0 : i32
    %c0_i32_1 = arith.constant 0 : i32
    return %arg0, %c0_i32, %c0_i32_0 : i32, i32, i32
  }
  func.func @transform_4(%arg0: i32, %arg1: i32) -> (i32, i32) {
    %c0_i32 = arith.constant 0 : i32
    %c0_i32_0 = arith.constant 0 : i32
    %c0_i32_1 = arith.constant 0 : i32
    return %c0_i32, %c0_i32_0 : i32, i32
  }
  func.func @transform_5(%arg0: i32, %arg1: i32) -> (i32, i32) {
    %c0_i32 = arith.constant 0 : i32
    %c0_i32_0 = arith.constant 0 : i32
    %c0_i32_1 = arith.constant 0 : i32
    return %c0_i32, %c0_i32_0 : i32, i32
  }
  func.func @transform_6(%arg0: i32, %arg1: i32) -> (i32, i32) {
    %c0_i32 = arith.constant 0 : i32
    %c0_i32_0 = arith.constant 0 : i32
    %c0_i32_1 = arith.constant 0 : i32
    return %c0_i32, %c0_i32_0 : i32, i32
  }
  func.func @transform_7(%arg0: i32, %arg1: i32) -> (i32, i32) {
    %c0_i32 = arith.constant 0 : i32
    %c0_i32_0 = arith.constant 0 : i32
    %c0_i32_1 = arith.constant 0 : i32
    return %c0_i32, %c0_i32_0 : i32, i32
  }
  func.func @transform_8(%arg0: i32, %arg1: i32) -> (i32, i32) {
    %c0_i32 = arith.constant 0 : i32
    %c0_i32_0 = arith.constant 0 : i32
    %c0_i32_1 = arith.constant 0 : i32
    return %c0_i32, %c0_i32_0 : i32, i32
  }
  func.func @transform_9(%arg0: i32, %arg1: i32) -> (i32, i32) {
    %c0_i32 = arith.constant 0 : i32
    %c0_i32_0 = arith.constant 0 : i32
    %c0_i32_1 = arith.constant 0 : i32
    return %c0_i32, %c0_i32_0 : i32, i32
  }
  func.func @transform_10(%arg0: i32, %arg1: i32) -> (i32, i32) {
    %c0_i32 = arith.constant 0 : i32
    %c0_i32_0 = arith.constant 0 : i32
    %c0_i32_1 = arith.constant 0 : i32
    return %c0_i32, %c0_i32_0 : i32, i32
  }
  func.func @transform_11(%arg0: i32, %arg1: i32) -> (i32, i32) {
    %c0_i32 = arith.constant 0 : i32
    %c0_i32_0 = arith.constant 0 : i32
    %c0_i32_1 = arith.constant 0 : i32
    return %c0_i32, %c0_i32_0 : i32, i32
  }
  func.func @transform_12(%arg0: i32, %arg1: i32) -> (i32, i32, i32) {
    %c0_i32 = arith.constant 0 : i32
    %c0_i32_0 = arith.constant 0 : i32
    return %arg0, %arg1, %c0_i32 : i32, i32, i32
  }
  func.func @transform_13(%arg0: i32, %arg1: i32) -> (i32, i32, i32, i32) {
    %c0_i32 = arith.constant 0 : i32
    %c0_i32_0 = arith.constant 0 : i32
    %c0_i32_1 = arith.constant 0 : i32
    return %arg0, %c0_i32, %arg1, %c0_i32_0 : i32, i32, i32, i32
  }
}

</mosaic_0001>

<llo_original>
// kernel: tpu_custom_call.1
$region0: #{tpu_custom_call.1}
  #allocation0 [shape = 'u32[]', space=smem, size = 0x4, offset = 0x4, fixed_abs, tag = 'smem constant byte address 0x4 - core index']
  #allocation1 [shape = 'u32[72,128]{1,0:T(1,128)}', space=vmem, size = 0x9000, scoped, tag = 'internal scratch']
  #allocation2 [shape = 'f32[8,32]{1,0:T(8,128)}', space=vmem, size = 0x1000, scoped, tag = 'scratch operand']
  #allocation3 [shape = 'f32[8,32]{1,0:T(8,128)}', space=vmem, size = 0x1000, scoped, tag = 'scratch operand']
  #allocation4 [shape = 'f32[32,32]{1,0:T(8,128)}', space=vmem, size = 0x4000, scoped, tag = 'scratch operand']
  %s0 = inlined_call_operand.hbm [shape: f32[2,8,32], index: 0, kind: input, shape index: {}]
  %s1 = inlined_call_operand.hbm [shape: f32[2,8,32], index: 1, kind: input, shape index: {}]
  %s2 = inlined_call_operand.hbm [shape: f32[2,8,32], index: 2, kind: input, shape index: {}]
  %s3 = inlined_call_operand.hbm [shape: f32[2,32,32], index: 3, kind: input, shape index: {}]
  %s4 = inlined_call_operand.hbm [shape: f32[32,32], index: 4, kind: input, shape index: {}]
  %s5 = inlined_call_operand.hbm [shape: f32[32,32], index: 5, kind: input, shape index: {}]
  %s6 = inlined_call_operand.hbm [shape: f32[32,32], index: 6, kind: input, shape index: {}]
  %s7 = inlined_call_operand.vmem [shape: f32[1,32], index: 7, kind: input, shape index: {}]
  %s8 = inlined_call_operand.vmem [shape: f32[1,32], index: 8, kind: input, shape index: {}]
  %s9 = inlined_call_operand.vmem [shape: f32[1,32], index: 9, kind: input, shape index: {}]
  %s10 = inlined_call_operand.hbm [shape: f32[32,32], index: 10, kind: input, shape index: {}]
  %s11 = inlined_call_operand.vmem [shape: f32[1,32], index: 11, kind: input, shape index: {}]
  %s12 = inlined_call_operand.hbm [shape: f32[2,8,32], index: 12, kind: output, shape index: {0}]
  %s13 = inlined_call_operand.hbm [shape: f32[2,4,8,8], index: 13, kind: output, shape index: {1}]
  %14 = xla_tuple %s12, %s13
  %s15 = sld [smem:[#allocation0]]
  $region125: #{tpu_custom_call.1} parent=0
    _
  %s17 = ssub.s32 1, %s15
  %s18 = scalar_select 0, %s17, %s15
  $region1: #{tpu_custom_call.1} parent=0
    #allocation5 [shape = 'u8[8192]{0}', space=vmem, size = 0x2000, scoped, tag = 'input window, operand 0']
    #allocation6 [shape = 's32[2]{0}', space=sflag, size = 0x8, scoped, tag = 'scoped memory for tpu_custom_call.1']
    #allocation7 [shape = 's32[2]{0}', space=sflag, size = 0x8, scoped, tag = 'scoped memory for tpu_custom_call.1']
    #allocation8 [shape = 'u8[8192]{0}', space=vmem, size = 0x2000, scoped, tag = 'input window, operand 1']
    #allocation9 [shape = 's32[2]{0}', space=sflag, size = 0x8, scoped, tag = 'scoped memory for tpu_custom_call.1']
    #allocation10 [shape = 'u8[8192]{0}', space=vmem, size = 0x2000, scoped, tag = 'input window, operand 2']
    #allocation11 [shape = 'u8[32768]{0}', space=vmem, size = 0x8000, scoped, tag = 'input window, operand 3']
    #allocation12 [shape = 's32[2]{0}', space=sflag, size = 0x8, scoped, tag = 'scoped memory for tpu_custom_call.1']
    #allocation13 [shape = 'u8[16384]{0}', space=vmem, size = 0x4000, scoped, tag = 'input window, operand 4, single buffered']
    #allocation14 [shape = 'u8[16384]{0}', space=vmem, size = 0x4000, scoped, tag = 'input window, operand 5, single buffered']
    #allocation15 [shape = 's32[1]{0}', space=sflag, size = 0x4, scoped, tag = 'scoped memory for tpu_custom_call.1']
    #allocation16 [shape = 'u8[16384]{0}', space=vmem, size = 0x4000, scoped, tag = 'input window, operand 6, single buffered']
    #allocation17 [shape = 'u8[16384]{0}', space=vmem, size = 0x4000, scoped, tag = 'input window, operand 10, single buffered']
    #allocation18 [shape = 's32[1]{0}', space=sflag, size = 0x4, scoped, tag = 'scoped memory for tpu_custom_call.1']
    #allocation19 [shape = 'u8[8192]{0}', space=vmem, size = 0x2000, scoped, tag = 'output window, operand 0']
    #allocation20 [shape = 'u8[32768]{0}', space=vmem, size = 0x8000, scoped, tag = 'output window, operand 1']
    #allocation21 [shape = 's32[2]{0}', space=sflag, size = 0x8, scoped, tag = 'scoped memory for tpu_custom_call.1']
    %19 = vsyncpa [#allocation6], 0
    %s20 = scalar_lea.sflag [#allocation6], 1
    %21 = vsyncpa %s20, 0
    %22 = vsyncpa [#allocation9], 0
    %s23 = scalar_lea.sflag [#allocation9], 1
    %24 = vsyncpa %s23, 0
    %25 = vsyncpa [#allocation12], 0
    %s26 = scalar_lea.sflag [#allocation12], 1
    %27 = vsyncpa %s26, 0
    %28 = vsyncpa [#allocation15], 0
    %29 = vsyncpa [#allocation18], 0
    %30 = vsyncpa [#allocation7], 0
    %s31 = scalar_lea.sflag [#allocation7], 1
    %32 = vsyncpa %s31, 0
    %33 = vsyncpa [#allocation21], 0
    %s34 = scalar_lea.sflag [#allocation21], 1
    %35 = vsyncpa %s34, 0
    loop: start=0, step=1, limit=4
    $region2: #{tpu_custom_call.1} parent=1 // loop_pre_header
      _
    $region3: #{tpu_custom_call.1} parent=1 // loop_header
      %s37 = sphi 0, %s41
      %p38 = scmp.ge.s32.totalorder %s37, 4
      %s44 = sphi 0, %s56
      %s45 = sphi 0, %s52
      %s46 = sphi 0, %s44
      %s47 = sphi 0, %s45
      %s48 = sphi 0, %s46
      %s49 = sphi 0, %s47
      %s61 = sphi 0, %s63
      %s64 = sphi 0, %s61
      %s65 = sphi 0, %s64
      %s81 = sphi 0, %s65
      %s87 = sphi 0, %s89
      %s90 = sphi 0, %s87
      %s91 = sphi 0, %s90
      %s107 = sphi 0, %s91
      %s113 = sphi 0, %s115
      %s116 = sphi 0, %s113
      %s117 = sphi 0, %s116
      %s133 = sphi 0, %s117
      %s139 = sphi 0, %s141
      %s142 = sphi 0, %s139
      %s143 = sphi 0, %s142
      %s159 = sphi 0, %s143
      %s163 = sphi 0, %s163
      %s165 = sphi 0, %s163
      %s166 = sphi 0, %s165
      %s180 = sphi 0, %s166
      %s184 = sphi 0, %s184
      %s186 = sphi 0, %s184
      %s187 = sphi 0, %s186
      %s201 = sphi 0, %s187
      %s205 = sphi 0, %s205
      %s207 = sphi 0, %s205
      %s208 = sphi 0, %s207
      %s222 = sphi 0, %s208
      %s226 = sphi 0, %s226
      %s228 = sphi 0, %s226
      %s229 = sphi 0, %s228
      %s243 = sphi 0, %s229
      %s247 = sphi 0, %s247
      %s249 = sphi 0, %s247
      %s250 = sphi 0, %s249
      %s264 = sphi 0, %s250
      %s268 = sphi 0, %s268
      %s270 = sphi 0, %s268
      %s271 = sphi 0, %s270
      %s285 = sphi 0, %s271
      %s289 = sphi 0, %s289
      %s291 = sphi 0, %s289
      %s292 = sphi 0, %s291
      %s306 = sphi 0, %s292
      %s310 = sphi 0, %s310
      %s312 = sphi 0, %s310
      %s313 = sphi 0, %s312
      %s327 = sphi 0, %s313
      %s335 = sphi 0, %s337
      %s338 = sphi 0, %s335
      %s339 = sphi 0, %s338
      %s355 = sphi 0, %s339
      %s363 = sphi 0, %s365
      %s366 = sphi 0, %s363
      %s367 = sphi 0, %s366
      %s383 = sphi 0, %s367
    $region4: #{tpu_custom_call.1} parent=1 // loop_header_branch
      %40 = sbr.rel (%p38) target = $region8
    $region5: #{tpu_custom_call.1} parent=1 // loop_body
      %s42 = ssub.s32 %s37, 1
      %s43 = ssub.s32 %s37, 2
      %s50 = sadd.s32 1, %s45
      %p51 = scmp.ge.s32.totalorder %s50, 1
      %s52 = scalar_select %p51, 0, %s50
      %s53 = sadd.s32 1, %s44
      %s54 = scalar_select %p51, %s53, %s44
      %p55 = scmp.ge.s32.totalorder %s54, 2
      %s56 = scalar_select %p55, 0, %s54
      %s57 = ssub.s32 %s44, %s56
      %s58 = ssub.s32 %s45, %s52
      %s59 = sor.u32 %s57, %s58
      %p60 = scmp.eq.s32.totalorder %s59, 0
      %s62 = sadd.s32 %s61, 1
      %s63 = scalar_select %p60, %s61, %s62
      %p66 = pneg %p60
      %p67 = scmp.eq.s32.totalorder %s37, 1
      %p68 = por %p66, %p67
      %p69 = scmp.ne.s32.totalorder %s61, %s64
      %p70 = scmp.eq.s32.totalorder %s37, 0
      %p71 = por %p69, %p70
      %p72 = scmp.ne.s32.totalorder %s61, %s64
      %p73 = scmp.eq.s32.totalorder %s42, 1
      %p74 = por %p72, %p73
      %p75 = scmp.ne.s32.totalorder %s64, %s65
      %p76 = scmp.eq.s32.totalorder %s42, 0
      %p77 = por %p75, %p76
      %p78 = scmp.ne.s32.totalorder %s64, %s65
      %p79 = scmp.eq.s32.totalorder %s43, 1
      %p80 = por %p78, %p79
      %p82 = scmp.ne.s32.totalorder %s65, %s81
      %p83 = scmp.eq.s32.totalorder %s43, 0
      %p84 = por %p82, %p83
      %s85 = ssub.s32 %s44, %s56
      %p86 = scmp.eq.s32.totalorder %s85, 0
      %s88 = sadd.s32 %s87, 1
      %s89 = scalar_select %p86, %s87, %s88
      %p92 = pneg %p86
      %p93 = scmp.eq.s32.totalorder %s37, 1
      %p94 = por %p92, %p93
      %p95 = scmp.ne.s32.totalorder %s87, %s90
      %p96 = scmp.eq.s32.totalorder %s37, 0
      %p97 = por %p95, %p96
      %p98 = scmp.ne.s32.totalorder %s87, %s90
      %p99 = scmp.eq.s32.totalorder %s42, 1
      %p100 = por %p98, %p99
      %p101 = scmp.ne.s32.totalorder %s90, %s91
      %p102 = scmp.eq.s32.totalorder %s42, 0
      %p103 = por %p101, %p102
      %p104 = scmp.ne.s32.totalorder %s90, %s91
      %p105 = scmp.eq.s32.totalorder %s43, 1
      %p106 = por %p104, %p105
      %p108 = scmp.ne.s32.totalorder %s91, %s107
      %p109 = scmp.eq.s32.totalorder %s43, 0
      %p110 = por %p108, %p109
      %s111 = ssub.s32 %s44, %s56
      %p112 = scmp.eq.s32.totalorder %s111, 0
      %s114 = sadd.s32 %s113, 1
      %s115 = scalar_select %p112, %s113, %s114
      %p118 = pneg %p112
      %p119 = scmp.eq.s32.totalorder %s37, 1
      %p120 = por %p118, %p119
      %p121 = scmp.ne.s32.totalorder %s113, %s116
      %p122 = scmp.eq.s32.totalorder %s37, 0
      %p123 = por %p121, %p122
      %p124 = scmp.ne.s32.totalorder %s113, %s116
      %p125 = scmp.eq.s32.totalorder %s42, 1
      %p126 = por %p124, %p125
      %p127 = scmp.ne.s32.totalorder %s116, %s117
      %p128 = scmp.eq.s32.totalorder %s42, 0
      %p129 = por %p127, %p128
      %p130 = scmp.ne.s32.totalorder %s116, %s117
      %p131 = scmp.eq.s32.totalorder %s43, 1
      %p132 = por %p130, %p131
      %p134 = scmp.ne.s32.totalorder %s117, %s133
      %p135 = scmp.eq.s32.totalorder %s43, 0
      %p136 = por %p134, %p135
      %s137 = ssub.s32 %s44, %s56
      %p138 = scmp.eq.s32.totalorder %s137, 0
      %s140 = sadd.s32 %s139, 1
      %s141 = scalar_select %p138, %s139, %s140
      %p144 = pneg %p138
      %p145 = scmp.eq.s32.totalorder %s37, 1
      %p146 = por %p144, %p145
      %p147 = scmp.ne.s32.totalorder %s139, %s142
      %p148 = scmp.eq.s32.totalorder %s37, 0
      %p149 = por %p147, %p148
      %p150 = scmp.ne.s32.totalorder %s139, %s142
      %p151 = scmp.eq.s32.totalorder %s42, 1
      %p152 = por %p150, %p151
      %p153 = scmp.ne.s32.totalorder %s142, %s143
      %p154 = scmp.eq.s32.totalorder %s42, 0
      %p155 = por %p153, %p154
      %p156 = scmp.ne.s32.totalorder %s142, %s143
      %p157 = scmp.eq.s32.totalorder %s43, 1
      %p158 = por %p156, %p157
      %p160 = scmp.ne.s32.totalorder %s143, %s159
      %p161 = scmp.eq.s32.totalorder %s43, 0
      %p162 = por %p160, %p161
      %s164 = sadd.s32 %s163, 1
      %p167 = scmp.eq.s32.totalorder %s37, 1
      %p168 = scmp.ne.s32.totalorder %s163, %s165
      %p169 = scmp.eq.s32.totalorder %s37, 0
      %p170 = por %p168, %p169
      %p171 = scmp.ne.s32.totalorder %s163, %s165
      %p172 = scmp.eq.s32.totalorder %s42, 1
      %p173 = por %p171, %p172
      %p174 = scmp.ne.s32.totalorder %s165, %s166
      %p175 = scmp.eq.s32.totalorder %s42, 0
      %p176 = por %p174, %p175
      %p177 = scmp.ne.s32.totalorder %s165, %s166
      %p178 = scmp.eq.s32.totalorder %s43, 1
      %p179 = por %p177, %p178
      %p181 = scmp.ne.s32.totalorder %s166, %s180
      %p182 = scmp.eq.s32.totalorder %s43, 0
      %p183 = por %p181, %p182
      %s185 = sadd.s32 %s184, 1
      %p188 = scmp.eq.s32.totalorder %s37, 1
      %p189 = scmp.ne.s32.totalorder %s184, %s186
      %p190 = scmp.eq.s32.totalorder %s37, 0
      %p191 = por %p189, %p190
      %p192 = scmp.ne.s32.totalorder %s184, %s186
      %p193 = scmp.eq.s32.totalorder %s42, 1
      %p194 = por %p192, %p193
      %p195 = scmp.ne.s32.totalorder %s186, %s187
      %p196 = scmp.eq.s32.totalorder %s42, 0
      %p197 = por %p195, %p196
      %p198 = scmp.ne.s32.totalorder %s186, %s187
      %p199 = scmp.eq.s32.totalorder %s43, 1
      %p200 = por %p198, %p199
      %p202 = scmp.ne.s32.totalorder %s187, %s201
      %p203 = scmp.eq.s32.totalorder %s43, 0
      %p204 = por %p202, %p203
      %s206 = sadd.s32 %s205, 1
      %p209 = scmp.eq.s32.totalorder %s37, 1
      %p210 = scmp.ne.s32.totalorder %s205, %s207
      %p211 = scmp.eq.s32.totalorder %s37, 0
      %p212 = por %p210, %p211
      %p213 = scmp.ne.s32.totalorder %s205, %s207
      %p214 = scmp.eq.s32.totalorder %s42, 1
      %p215 = por %p213, %p214
      %p216 = scmp.ne.s32.totalorder %s207, %s208
      %p217 = scmp.eq.s32.totalorder %s42, 0
      %p218 = por %p216, %p217
      %p219 = scmp.ne.s32.totalorder %s207, %s208
      %p220 = scmp.eq.s32.totalorder %s43, 1
      %p221 = por %p219, %p220
      %p223 = scmp.ne.s32.totalorder %s208, %s222
      %p224 = scmp.eq.s32.totalorder %s43, 0
      %p225 = por %p223, %p224
      %s227 = sadd.s32 %s226, 1
      %p230 = scmp.eq.s32.totalorder %s37, 1
      %p231 = scmp.ne.s32.totalorder %s226, %s228
      %p232 = scmp.eq.s32.totalorder %s37, 0
      %p233 = por %p231, %p232
      %p234 = scmp.ne.s32.totalorder %s226, %s228
      %p235 = scmp.eq.s32.totalorder %s42, 1
      %p236 = por %p234, %p235
      %p237 = scmp.ne.s32.totalorder %s228, %s229
      %p238 = scmp.eq.s32.totalorder %s42, 0
      %p239 = por %p237, %p238
      %p240 = scmp.ne.s32.totalorder %s228, %s229
      %p241 = scmp.eq.s32.totalorder %s43, 1
      %p242 = por %p240, %p241
      %p244 = scmp.ne.s32.totalorder %s229, %s243
      %p245 = scmp.eq.s32.totalorder %s43, 0
      %p246 = por %p244, %p245
      %s248 = sadd.s32 %s247, 1
      %p251 = scmp.eq.s32.totalorder %s37, 1
      %p252 = scmp.ne.s32.totalorder %s247, %s249
      %p253 = scmp.eq.s32.totalorder %s37, 0
      %p254 = por %p252, %p253
      %p255 = scmp.ne.s32.totalorder %s247, %s249
      %p256 = scmp.eq.s32.totalorder %s42, 1
      %p257 = por %p255, %p256
      %p258 = scmp.ne.s32.totalorder %s249, %s250
      %p259 = scmp.eq.s32.totalorder %s42, 0
      %p260 = por %p258, %p259
      %p261 = scmp.ne.s32.totalorder %s249, %s250
      %p262 = scmp.eq.s32.totalorder %s43, 1
      %p263 = por %p261, %p262
      %p265 = scmp.ne.s32.totalorder %s250, %s264
      %p266 = scmp.eq.s32.totalorder %s43, 0
      %p267 = por %p265, %p266
      %s269 = sadd.s32 %s268, 1
      %p272 = scmp.eq.s32.totalorder %s37, 1
      %p273 = scmp.ne.s32.totalorder %s268, %s270
      %p274 = scmp.eq.s32.totalorder %s37, 0
      %p275 = por %p273, %p274
      %p276 = scmp.ne.s32.totalorder %s268, %s270
      %p277 = scmp.eq.s32.totalorder %s42, 1
      %p278 = por %p276, %p277
      %p279 = scmp.ne.s32.totalorder %s270, %s271
      %p280 = scmp.eq.s32.totalorder %s42, 0
      %p281 = por %p279, %p280
      %p282 = scmp.ne.s32.totalorder %s270, %s271
      %p283 = scmp.eq.s32.totalorder %s43, 1
      %p284 = por %p282, %p283
      %p286 = scmp.ne.s32.totalorder %s271, %s285
      %p287 = scmp.eq.s32.totalorder %s43, 0
      %p288 = por %p286, %p287
      %s290 = sadd.s32 %s289, 1
      %p293 = scmp.eq.s32.totalorder %s37, 1
      %p294 = scmp.ne.s32.totalorder %s289, %s291
      %p295 = scmp.eq.s32.totalorder %s37, 0
      %p296 = por %p294, %p295
      %p297 = scmp.ne.s32.totalorder %s289, %s291
      %p298 = scmp.eq.s32.totalorder %s42, 1
      %p299 = por %p297, %p298
      %p300 = scmp.ne.s32.totalorder %s291, %s292
      %p301 = scmp.eq.s32.totalorder %s42, 0
      %p302 = por %p300, %p301
      %p303 = scmp.ne.s32.totalorder %s291, %s292
      %p304 = scmp.eq.s32.totalorder %s43, 1
      %p305 = por %p303, %p304
      %p307 = scmp.ne.s32.totalorder %s292, %s306
      %p308 = scmp.eq.s32.totalorder %s43, 0
      %p309 = por %p307, %p308
      %s311 = sadd.s32 %s310, 1
      %p314 = scmp.eq.s32.totalorder %s37, 1
      %p315 = scmp.ne.s32.totalorder %s310, %s312
      %p316 = scmp.eq.s32.totalorder %s37, 0
      %p317 = por %p315, %p316
      %p318 = scmp.ne.s32.totalorder %s310, %s312
      %p319 = scmp.eq.s32.totalorder %s42, 1
      %p320 = por %p318, %p319
      %p321 = scmp.ne.s32.totalorder %s312, %s313
      %p322 = scmp.eq.s32.totalorder %s42, 0
      %p323 = por %p321, %p322
      %p324 = scmp.ne.s32.totalorder %s312, %s313
      %p325 = scmp.eq.s32.totalorder %s43, 1
      %p326 = por %p324, %p325
      %p328 = scmp.ne.s32.totalorder %s313, %s327
      %p329 = scmp.eq.s32.totalorder %s43, 0
      %p330 = por %p328, %p329
      %s331 = ssub.s32 %s44, %s56
      %s332 = ssub.s32 %s45, %s52
      %s333 = sor.u32 %s331, %s332
      %p334 = scmp.eq.s32.totalorder %s333, 0
      %s336 = sadd.s32 %s335, 1
      %s337 = scalar_select %p334, %s335, %s336
      %p340 = pneg %p334
      %p341 = scmp.eq.s32.totalorder %s37, 1
      %p342 = por %p340, %p341
      %p343 = scmp.ne.s32.totalorder %s335, %s338
      %p344 = scmp.eq.s32.totalorder %s37, 0
      %p345 = por %p343, %p344
      %p346 = scmp.ne.s32.totalorder %s335, %s338
      %p347 = scmp.eq.s32.totalorder %s42, 1
      %p348 = por %p346, %p347
      %p349 = scmp.ne.s32.totalorder %s338, %s339
      %p350 = scmp.eq.s32.totalorder %s42, 0
      %p351 = por %p349, %p350
      %p352 = scmp.ne.s32.totalorder %s338, %s339
      %p353 = scmp.eq.s32.totalorder %s43, 1
      %p354 = por %p352, %p353
      %p356 = scmp.ne.s32.totalorder %s339, %s355
      %p357 = scmp.eq.s32.totalorder %s43, 0
      %p358 = por %p356, %p357
      %s359 = ssub.s32 %s44, %s56
      %s360 = ssub.s32 %s45, %s52
      %s361 = sor.u32 %s359, %s360
      %p362 = scmp.eq.s32.totalorder %s361, 0
      %s364 = sadd.s32 %s363, 1
      %s365 = scalar_select %p362, %s363, %s364
      %p368 = pneg %p362
      %p369 = scmp.eq.s32.totalorder %s37, 1
      %p370 = por %p368, %p369
      %p371 = scmp.ne.s32.totalorder %s363, %s366
      %p372 = scmp.eq.s32.totalorder %s37, 0
      %p373 = por %p371, %p372
      %p374 = scmp.ne.s32.totalorder %s363, %s366
      %p375 = scmp.eq.s32.totalorder %s42, 1
      %p376 = por %p374, %p375
      %p377 = scmp.ne.s32.totalorder %s366, %s367
      %p378 = scmp.eq.s32.totalorder %s42, 0
      %p379 = por %p377, %p378
      %p380 = scmp.ne.s32.totalorder %s366, %s367
      %p381 = scmp.eq.s32.totalorder %s43, 1
      %p382 = por %p380, %p381
      %p384 = scmp.ne.s32.totalorder %s367, %s383
      %p385 = scmp.eq.s32.totalorder %s43, 0
      %p386 = por %p384, %p385
      %p387 = scmp.le.s32.totalorder 1, %s37
      %p388 = scmp.lt.s32.totalorder %s37, 3
      %p389 = pnand %p387, %p388
      %p390 = pneg %p389
      // Predicated region
      $region9: #{tpu_custom_call.1} parent=5 // pred_check
        _
      $region10: #{tpu_custom_call.1} parent=5 // pred_check_branch
        %392 = sbr.rel (%p389) target = $region12
      $region11: #{tpu_custom_call.1} parent=5 // pred_region
        %s393 = ssub.s32 %s37, 1
        // Predicated region
        $region13: #{tpu_custom_call.1} parent=11 // pred_check
          %p394 = pneg %p176
        $region14: #{tpu_custom_call.1} parent=11 // pred_check_branch
          %396 = sbr.rel (%p394) target = $region16
        $region15: #{tpu_custom_call.1} parent=11 // pred_region
          %398 = vsyncadd [#allocation12], 0
          %s399 = sshll.u32 %s4, 4
          %s400 = int_to_ptr.hbm [resolvable:$true] %s399
          %s401 = sshll.u32 [#allocation13], 4
          %s402 = int_to_ptr.vmem [resolvable:$true] %s401
          %407 = dma.hbm_to_vmem [thread:$0]  %s400, 512, %s402, [#allocation12], 128, 128, 8
        $region16: #{tpu_custom_call.1} parent=11 // pred_fallthru
          _
        // Predicated region
        $region17: #{tpu_custom_call.1} parent=11 // pred_check
          %p408 = pneg %p197
        $region18: #{tpu_custom_call.1} parent=11 // pred_check_branch
          %410 = sbr.rel (%p408) target = $region20
        $region19: #{tpu_custom_call.1} parent=11 // pred_region
          %412 = vsyncadd [#allocation15], 0
          %s413 = sshll.u32 %s5, 4
          %s414 = int_to_ptr.hbm [resolvable:$true] %s413
          %s415 = sshll.u32 [#allocation14], 4
          %s416 = int_to_ptr.vmem [resolvable:$true] %s415
          %421 = dma.hbm_to_vmem [thread:$0]  %s414, 512, %s416, [#allocation15], 128, 128, 8
        $region20: #{tpu_custom_call.1} parent=11 // pred_fallthru
          _
        // Predicated region
        $region21: #{tpu_custom_call.1} parent=11 // pred_check
          %p422 = pneg %p218
        $region22: #{tpu_custom_call.1} parent=11 // pred_check_branch
          %424 = sbr.rel (%p422) target = $region24
        $region23: #{tpu_custom_call.1} parent=11 // pred_region
          %426 = vsyncadd [#allocation15], 0
          %s427 = sshll.u32 %s6, 4
          %s428 = int_to_ptr.hbm [resolvable:$true] %s427
          %s429 = sshll.u32 [#allocation16], 4
          %s430 = int_to_ptr.vmem [resolvable:$true] %s429
          %435 = dma.hbm_to_vmem [thread:$0]  %s428, 512, %s430, [#allocation15], 128, 128, 8
        $region24: #{tpu_custom_call.1} parent=11 // pred_fallthru
          _
        // Predicated region
        $region25: #{tpu_custom_call.1} parent=11 // pred_check
          %p436 = pneg %p239
        $region26: #{tpu_custom_call.1} parent=11 // pred_check_branch
          %438 = sbr.rel (%p436) target = $region28
        $region27: #{tpu_custom_call.1} parent=11 // pred_region
          _
        $region28: #{tpu_custom_call.1} parent=11 // pred_fallthru
          _
        // Predicated region
        $region29: #{tpu_custom_call.1} parent=11 // pred_check
          %p439 = pneg %p260
        $region30: #{tpu_custom_call.1} parent=11 // pred_check_branch
          %441 = sbr.rel (%p439) target = $region32
        $region31: #{tpu_custom_call.1} parent=11 // pred_region
          _
        $region32: #{tpu_custom_call.1} parent=11 // pred_fallthru
          _
        // Predicated region
        $region33: #{tpu_custom_call.1} parent=11 // pred_check
          %p442 = pneg %p281
        $region34: #{tpu_custom_call.1} parent=11 // pred_check_branch
          %444 = sbr.rel (%p442) target = $region36
        $region35: #{tpu_custom_call.1} parent=11 // pred_region
          _
        $region36: #{tpu_custom_call.1} parent=11 // pred_fallthru
          _
        // Predicated region
        $region37: #{tpu_custom_call.1} parent=11 // pred_check
          %p445 = pneg %p302
        $region38: #{tpu_custom_call.1} parent=11 // pred_check_branch
          %447 = sbr.rel (%p445) target = $region40
        $region39: #{tpu_custom_call.1} parent=11 // pred_region
          %449 = vsyncadd [#allocation18], 0
          %s450 = sshll.u32 %s10, 4
          %s451 = int_to_ptr.hbm [resolvable:$true] %s450
          %s452 = sshll.u32 [#allocation17], 4
          %s453 = int_to_ptr.vmem [resolvable:$true] %s452
          %458 = dma.hbm_to_vmem [thread:$0]  %s451, 512, %s453, [#allocation18], 128, 128, 8
        $region40: #{tpu_custom_call.1} parent=11 // pred_fallthru
          _
        // Predicated region
        $region41: #{tpu_custom_call.1} parent=11 // pred_check
          %p459 = pneg %p323
        $region42: #{tpu_custom_call.1} parent=11 // pred_check_branch
          %461 = sbr.rel (%p459) target = $region44
        $region43: #{tpu_custom_call.1} parent=11 // pred_region
          _
        $region44: #{tpu_custom_call.1} parent=11 // pred_fallthru
          _
      $region12: #{tpu_custom_call.1} parent=5 // pred_fallthru
        _
      %p462 = scmp.lt.s32.totalorder %s37, 2
      // Predicated region
      $region45: #{tpu_custom_call.1} parent=5 // pred_check
        %p463 = pneg %p462
      $region46: #{tpu_custom_call.1} parent=5 // pred_check_branch
        %465 = sbr.rel (%p463) target = $region48
      $region47: #{tpu_custom_call.1} parent=5 // pred_region
        // Predicated region
        $region49: #{tpu_custom_call.1} parent=47 // pred_check
          %p466 = pneg %p71
        $region50: #{tpu_custom_call.1} parent=47 // pred_check_branch
          %468 = sbr.rel (%p466) target = $region52
        $region51: #{tpu_custom_call.1} parent=47 // pred_region
          %s469 = sand.u32 %s61, 1
          %s470 = scalar_lea.sflag [#allocation6], %s469
          %s471 = sand.u32 %s61, 1
          %s472 = smul.addr %s471, 8
          %s473 = scalar_lea.vmem [#allocation5], %s472
          %475 = vsyncadd %s470, 0
          %s476 = sadd.s32 %s45, %s44
          %s477 = smul.addr %s476, 8
          %s478 = scalar_lea.hbm %s0, %s477
          %s480 = sshll.u32 %s478, 4
          %s481 = int_to_ptr.hbm [resolvable:$true] %s480
          %s482 = sshll.u32 %s473, 4
          %s483 = int_to_ptr.vmem [resolvable:$true] %s482
          %485 = dma.hbm_to_vmem [thread:$0]  %s481, 128, %s483, %s470
        $region52: #{tpu_custom_call.1} parent=47 // pred_fallthru
          _
        // Predicated region
        $region53: #{tpu_custom_call.1} parent=47 // pred_check
          %p486 = pneg %p97
        $region54: #{tpu_custom_call.1} parent=47 // pred_check_branch
          %488 = sbr.rel (%p486) target = $region56
        $region55: #{tpu_custom_call.1} parent=47 // pred_region
          %s489 = sand.u32 %s37, 1
          %s490 = scalar_lea.sflag [#allocation9], %s489
          %s491 = sand.u32 %s87, 1
          %s492 = smul.addr %s491, 8
          %s493 = scalar_lea.vmem [#allocation8], %s492
          %495 = vsyncadd %s490, 0
          %s496 = smul.addr %s44, 8
          %s497 = scalar_lea.hbm %s1, %s496
          %s499 = sshll.u32 %s497, 4
          %s500 = int_to_ptr.hbm [resolvable:$true] %s499
          %s501 = sshll.u32 %s493, 4
          %s502 = int_to_ptr.vmem [resolvable:$true] %s501
          %504 = dma.hbm_to_vmem [thread:$0]  %s500, 128, %s502, %s490
        $region56: #{tpu_custom_call.1} parent=47 // pred_fallthru
          _
        // Predicated region
        $region57: #{tpu_custom_call.1} parent=47 // pred_check
          %p505 = pneg %p123
        $region58: #{tpu_custom_call.1} parent=47 // pred_check_branch
          %507 = sbr.rel (%p505) target = $region60
        $region59: #{tpu_custom_call.1} parent=47 // pred_region
          %s508 = sand.u32 %s37, 1
          %s509 = scalar_lea.sflag [#allocation9], %s508
          %s510 = sand.u32 %s113, 1
          %s511 = smul.addr %s510, 8
          %s512 = scalar_lea.vmem [#allocation10], %s511
          %514 = vsyncadd %s509, 0
          %s515 = smul.addr %s44, 8
          %s516 = scalar_lea.hbm %s2, %s515
          %s518 = sshll.u32 %s516, 4
          %s519 = int_to_ptr.hbm [resolvable:$true] %s518
          %s520 = sshll.u32 %s512, 4
          %s521 = int_to_ptr.vmem [resolvable:$true] %s520
          %523 = dma.hbm_to_vmem [thread:$0]  %s519, 128, %s521, %s509
        $region60: #{tpu_custom_call.1} parent=47 // pred_fallthru
          _
        // Predicated region
        $region61: #{tpu_custom_call.1} parent=47 // pred_check
          %p524 = pneg %p149
        $region62: #{tpu_custom_call.1} parent=47 // pred_check_branch
          %526 = sbr.rel (%p524) target = $region64
        $region63: #{tpu_custom_call.1} parent=47 // pred_region
          %s527 = sand.u32 %s37, 1
          %s528 = scalar_lea.sflag [#allocation12], %s527
          %s529 = sand.u32 %s139, 1
          %s530 = smul.addr %s529, 32
          %s531 = scalar_lea.vmem [#allocation11], %s530
          %533 = vsyncadd %s528, 0
          %s534 = smul.addr %s44, 4
          %s535 = smul.addr %s534, 8
          %s536 = scalar_lea.hbm %s3, %s535
          %s537 = sshll.u32 %s536, 4
          %s538 = int_to_ptr.hbm [resolvable:$true] %s537
          %s539 = sshll.u32 %s531, 4
          %s540 = int_to_ptr.vmem [resolvable:$true] %s539
          %545 = dma.hbm_to_vmem [thread:$0]  %s538, 512, %s540, %s528, 128, 128, 8
        $region64: #{tpu_custom_call.1} parent=47 // pred_fallthru
          _
      $region48: #{tpu_custom_call.1} parent=5 // pred_fallthru
        _
      %p546 = scmp.le.s32.totalorder 1, %s37
      %p547 = scmp.lt.s32.totalorder %s37, 3
      %p548 = pnand %p546, %p547
      %p549 = pneg %p548
      // Predicated region
      $region65: #{tpu_custom_call.1} parent=5 // pred_check
        _
      $region66: #{tpu_custom_call.1} parent=5 // pred_check_branch
        %551 = sbr.rel (%p548) target = $region68
      $region67: #{tpu_custom_call.1} parent=5 // pred_region
        %s552 = ssub.s32 %s37, 1
        %s553 = sand.u32 %s64, 1
        %s554 = scalar_lea.sflag [#allocation6], %s553
        %s555 = sand.u32 %s64, 1
        %s556 = smul.addr %s555, 8
        %s557 = scalar_lea.vmem [#allocation5], %s556
        // Predicated region
        $region69: #{tpu_custom_call.1} parent=67 // pred_check
          %p558 = pneg %p77
        $region70: #{tpu_custom_call.1} parent=67 // pred_check_branch
          %560 = sbr.rel (%p558) target = $region72
        $region71: #{tpu_custom_call.1} parent=67 // pred_region
          %562 = dma.done %s554, 128
        $region72: #{tpu_custom_call.1} parent=67 // pred_fallthru
          _
        %s563 = sand.u32 %s42, 1
        %s564 = scalar_lea.sflag [#allocation9], %s563
        %s565 = sand.u32 %s90, 1
        %s566 = smul.addr %s565, 8
        %s567 = scalar_lea.vmem [#allocation8], %s566
        // Predicated region
        $region73: #{tpu_custom_call.1} parent=67 // pred_check
          %p568 = pneg %p103
        $region74: #{tpu_custom_call.1} parent=67 // pred_check_branch
          %570 = sbr.rel (%p568) target = $region76
        $region75: #{tpu_custom_call.1} parent=67 // pred_region
          %572 = dma.done %s564, 128
        $region76: #{tpu_custom_call.1} parent=67 // pred_fallthru
          _
        %s573 = sand.u32 %s42, 1
        %s574 = scalar_lea.sflag [#allocation9], %s573
        %s575 = sand.u32 %s116, 1
        %s576 = smul.addr %s575, 8
        %s577 = scalar_lea.vmem [#allocation10], %s576
        // Predicated region
        $region77: #{tpu_custom_call.1} parent=67 // pred_check
          %p578 = pneg %p129
        $region78: #{tpu_custom_call.1} parent=67 // pred_check_branch
          %580 = sbr.rel (%p578) target = $region80
        $region79: #{tpu_custom_call.1} parent=67 // pred_region
          %582 = dma.done %s574, 128
        $region80: #{tpu_custom_call.1} parent=67 // pred_fallthru
          _
        %s583 = sand.u32 %s42, 1
        %s584 = scalar_lea.sflag [#allocation12], %s583
        %s585 = sand.u32 %s142, 1
        %s586 = smul.addr %s585, 32
        %s587 = scalar_lea.vmem [#allocation11], %s586
        // Predicated region
        $region81: #{tpu_custom_call.1} parent=67 // pred_check
          %p588 = pneg %p155
        $region82: #{tpu_custom_call.1} parent=67 // pred_check_branch
          %590 = sbr.rel (%p588) target = $region84
        $region83: #{tpu_custom_call.1} parent=67 // pred_region
          %592 = dma.done %s584, 512
        $region84: #{tpu_custom_call.1} parent=67 // pred_fallthru
          _
        // Predicated region
        $region85: #{tpu_custom_call.1} parent=67 // pred_check
          %p593 = pneg %p176
        $region86: #{tpu_custom_call.1} parent=67 // pred_check_branch
          %595 = sbr.rel (%p593) target = $region88
        $region87: #{tpu_custom_call.1} parent=67 // pred_region
          %597 = dma.done [#allocation12], 512
        $region88: #{tpu_custom_call.1} parent=67 // pred_fallthru
          _
        // Predicated region
        $region89: #{tpu_custom_call.1} parent=67 // pred_check
          %p598 = pneg %p197
        $region90: #{tpu_custom_call.1} parent=67 // pred_check_branch
          %600 = sbr.rel (%p598) target = $region92
        $region91: #{tpu_custom_call.1} parent=67 // pred_region
          %602 = dma.done [#allocation15], 512
        $region92: #{tpu_custom_call.1} parent=67 // pred_fallthru
          _
        // Predicated region
        $region93: #{tpu_custom_call.1} parent=67 // pred_check
          %p603 = pneg %p218
        $region94: #{tpu_custom_call.1} parent=67 // pred_check_branch
          %605 = sbr.rel (%p603) target = $region96
        $region95: #{tpu_custom_call.1} parent=67 // pred_region
          %607 = dma.done [#allocation15], 512
        $region96: #{tpu_custom_call.1} parent=67 // pred_fallthru
          _
        // Predicated region
        $region97: #{tpu_custom_call.1} parent=67 // pred_check
          %p608 = pneg %p302
        $region98: #{tpu_custom_call.1} parent=67 // pred_check_branch
          %610 = sbr.rel (%p608) target = $region100
        $region99: #{tpu_custom_call.1} parent=67 // pred_region
          %612 = dma.done [#allocation18], 512
        $region100: #{tpu_custom_call.1} parent=67 // pred_fallthru
          _
        %s613 = sand.u32 %s64, 1
        %s614 = scalar_lea.sflag [#allocation6], %s613
        %s615 = sand.u32 %s64, 1
        %s616 = smul.addr %s615, 8
        %s617 = scalar_lea.vmem [#allocation5], %s616
        %p618 = pneg %p77
        %p619 = pneg %p74
        %s620 = sand.u32 %s42, 1
        %s621 = scalar_lea.sflag [#allocation9], %s620
        %s622 = sand.u32 %s90, 1
        %s623 = smul.addr %s622, 8
        %s624 = scalar_lea.vmem [#allocation8], %s623
        %p625 = pneg %p103
        %p626 = pneg %p100
        %s627 = sand.u32 %s42, 1
        %s628 = scalar_lea.sflag [#allocation9], %s627
        %s629 = sand.u32 %s116, 1
        %s630 = smul.addr %s629, 8
        %s631 = scalar_lea.vmem [#allocation10], %s630
        %p632 = pneg %p129
        %p633 = pneg %p126
        %s634 = sand.u32 %s42, 1
        %s635 = scalar_lea.sflag [#allocation12], %s634
        %s636 = sand.u32 %s142, 1
        %s637 = smul.addr %s636, 32
        %s638 = scalar_lea.vmem [#allocation11], %s637
        %p639 = pneg %p155
        %p640 = pneg %p152
        %p641 = pneg %p176
        %p642 = pneg %p173
        %p643 = pneg %p197
        %p644 = pneg %p194
        %p645 = pneg %p218
        %p646 = pneg %p215
        %p647 = pneg %p239
        %p648 = pneg %p236
        %p649 = pneg %p260
        %p650 = pneg %p257
        %p651 = pneg %p281
        %p652 = pneg %p278
        %p653 = pneg %p302
        %p654 = pneg %p299
        %p655 = pneg %p323
        %p656 = pneg %p320
        %p657 = pneg %p351
        %p658 = pneg %p348
        %s659 = sand.u32 %s338, 1
        %s660 = scalar_lea.sflag [#allocation7], %s659
        %s661 = sand.u32 %s338, 1
        %s662 = smul.addr %s661, 8
        %s663 = scalar_lea.vmem [#allocation19], %s662
        %p664 = pneg %p379
        %p665 = pneg %p376
        %s666 = sand.u32 %s366, 1
        %s667 = scalar_lea.sflag [#allocation21], %s666
        %s668 = sand.u32 %s366, 1
        %s669 = smul.addr %s668, 32
        %s670 = scalar_lea.vmem [#allocation20], %s669
        %p671 = scmp.eq.s32.totalorder %s47, 0
        // Predicated region
        $region101: #{tpu_custom_call.1} parent=67 // pred_check
          %p672 = pneg %p671
        $region102: #{tpu_custom_call.1} parent=67 // pred_check_branch
          %674 = sbr.rel (%p672) target = $region104
        $region103: #{tpu_custom_call.1} parent=67 // pred_region
          %v675 = vld [vmem:[%s587] sm:$0xff]
          %v676 = vld [vmem:[%s587 + $0x8] sm:$0xff]
          %v677 = vld [vmem:[%s587 + $0x10] sm:$0xff]
          %v678 = vld [vmem:[%s587 + $0x18] sm:$0xff]
          %v679 = vld [vmem:[#allocation13] sm:$0xff]
          %v680 = vld [vmem:[#allocation13 + $0x8] sm:$0xff]
          %v681 = vld [vmem:[#allocation13 + $0x10] sm:$0xff]
          %v682 = vld [vmem:[#allocation13 + $0x18] sm:$0xff]
          %v683 = vmul.f32 %v679, %v675
          %v684 = vmul.f32 %v680, %v676
          %v685 = vmul.f32 %v681, %v677
          %v686 = vmul.f32 %v682, %v678
          %vm687 = vcmask 261120
          %688 = vst.msk [vmem:[#allocation4] sm:$0xff] %vm687, %v683
          %689 = vst.msk [vmem:[#allocation4 + $0x8] sm:$0xff] %vm687, %v684
          %690 = vst.msk [vmem:[#allocation4 + $0x10] sm:$0xff] %vm687, %v685
          %691 = vst.msk [vmem:[#allocation4 + $0x18] sm:$0xff] %vm687, %v686
          %v692 = vld [vmem:[#allocation14] sm:$0xff]
          %v693 = vld [vmem:[#allocation14 + $0x8] sm:$0xff]
          %v694 = vld [vmem:[#allocation14 + $0x10] sm:$0xff]
          %v695 = vld [vmem:[#allocation14 + $0x18] sm:$0xff]
          %v696 = vmul.f32 %v692, %v675
          %v697 = vmul.f32 %v693, %v676
          %v698 = vmul.f32 %v694, %v677
          %v699 = vmul.f32 %v695, %v678
          %v700 = vld [vmem:[#allocation16] sm:$0xff]
          %v701 = vld [vmem:[#allocation16 + $0x8] sm:$0xff]
          %v702 = vld [vmem:[#allocation16 + $0x10] sm:$0xff]
          %v703 = vld [vmem:[#allocation16 + $0x18] sm:$0xff]
          %v704 = vmul.f32 %v700, %v675
          %v705 = vmul.f32 %v701, %v676
          %v706 = vmul.f32 %v702, %v677
          %v707 = vmul.f32 %v703, %v678
          %v708 = vld [vmem:[%s567] sm:$0xff]
          %v709 = vld [vmem:[%s8] sm:$0x1]
          %v711 = vperm.slane %v709, 0
          %v714 = vsel %vm687, %v708, 0
          %v717 = vsel %vm687, %v696, 0
          %v720 = vsel %vm687, %v697, 0
          %v723 = vsel %vm687, %v698, 0
          %v726 = vsel %vm687, %v699, 0
          %728 = vmatpush.xpose.msra.mxu0 0.0
          %729 = vmatpush.xpose.msra.mxu0 0.0
          %730 = vmatpush.xpose.msra.mxu0 0.0
          %731 = vmatpush.xpose.msra.mxu0 0.0
          %732 = vmatpush.xpose.msra.mxu0 0.0
          %733 = vmatpush.xpose.msra.mxu0 0.0
          %734 = vmatpush.xpose.msra.mxu0 0.0
          %735 = vmatpush.xpose.msra.mxu0 0.0
          %736 = vmatpush.xpose.msra.mxu0 0.0
          %737 = vmatpush.xpose.msra.mxu0 0.0
          %738 = vmatpush.xpose.msra.mxu0 0.0
          %739 = vmatpush.xpose.msra.mxu0 0.0
          %740 = vmatpush.xpose.msra.mxu0 %v726
          %741 = vmatpush.xpose.msra.mxu0 %v723
          %742 = vmatpush.xpose.msra.mxu0 %v720
          %743 = vmatpush.xpose.msra.mxu0 %v717
          %744 = vmatmul.f32.gmra.mxu0 %v714
          %v745 = vpop.f32.mrf.mxu0
          %v746 = vadd.f32 %v711, %v745
          %747 = vdwg.mxu0
          %v748 = vld [vmem:[%s577] sm:$0xff]
          %v749 = vld [vmem:[%s9] sm:$0x1]
          %v751 = vperm.slane %v749, 0
          %v754 = vsel %vm687, %v748, 0
          %v757 = vsel %vm687, %v704, 0
          %v760 = vsel %vm687, %v705, 0
          %v763 = vsel %vm687, %v706, 0
          %v766 = vsel %vm687, %v707, 0
          %768 = vmatpush.xpose.msra.mxu0 0.0
          %769 = vmatpush.xpose.msra.mxu0 0.0
          %770 = vmatpush.xpose.msra.mxu0 0.0
          %771 = vmatpush.xpose.msra.mxu0 0.0
          %772 = vmatpush.xpose.msra.mxu0 0.0
          %773 = vmatpush.xpose.msra.mxu0 0.0
          %774 = vmatpush.xpose.msra.mxu0 0.0
          %775 = vmatpush.xpose.msra.mxu0 0.0
          %776 = vmatpush.xpose.msra.mxu0 0.0
          %777 = vmatpush.xpose.msra.mxu0 0.0
          %778 = vmatpush.xpose.msra.mxu0 0.0
          %779 = vmatpush.xpose.msra.mxu0 0.0
          %780 = vmatpush.xpose.msra.mxu0 %v766
          %781 = vmatpush.xpose.msra.mxu0 %v763
          %782 = vmatpush.xpose.msra.mxu0 %v760
          %783 = vmatpush.xpose.msra.mxu0 %v757
          %784 = vmatmul.f32.gmra.mxu0 %v754
          %v785 = vpop.f32.mrf.mxu0
          %v786 = vadd.f32 %v751, %v785
          %787 = vdwg.mxu0
          %788 = vst.msk [vmem:[#allocation2] sm:$0xff] %vm687, %v746
          %789 = vst.msk [vmem:[#allocation3] sm:$0xff] %vm687, %v786
        $region104: #{tpu_custom_call.1} parent=67 // pred_fallthru
          _
        %v790 = vld [vmem:[%s557] sm:$0xff]
        %v791 = vld [vmem:[#allocation4] sm:$0xff]
        %v792 = vld [vmem:[#allocation4 + $0x8] sm:$0xff]
        %v793 = vld [vmem:[#allocation4 + $0x10] sm:$0xff]
        %v794 = vld [vmem:[#allocation4 + $0x18] sm:$0xff]
        %v795 = vld [vmem:[%s7] sm:$0x1]
        %v797 = vperm.slane %v795, 0
        %vm799 = vcmask 261120
        %v801 = vsel %vm799, %v790, 0
        %v804 = vsel %vm799, %v791, 0
        %v807 = vsel %vm799, %v792, 0
        %v810 = vsel %vm799, %v793, 0
        %v813 = vsel %vm799, %v794, 0
        %815 = vmatpush.xpose.msra.mxu0 0.0
        %816 = vmatpush.xpose.msra.mxu0 0.0
        %817 = vmatpush.xpose.msra.mxu0 0.0
        %818 = vmatpush.xpose.msra.mxu0 0.0
        %819 = vmatpush.xpose.msra.mxu0 0.0
        %820 = vmatpush.xpose.msra.mxu0 0.0
        %821 = vmatpush.xpose.msra.mxu0 0.0
        %822 = vmatpush.xpose.msra.mxu0 0.0
        %823 = vmatpush.xpose.msra.mxu0 0.0
        %824 = vmatpush.xpose.msra.mxu0 0.0
        %825 = vmatpush.xpose.msra.mxu0 0.0
        %826 = vmatpush.xpose.msra.mxu0 0.0
        %827 = vmatpush.xpose.msra.mxu0 %v813
        %828 = vmatpush.xpose.msra.mxu0 %v810
        %829 = vmatpush.xpose.msra.mxu0 %v807
        %830 = vmatpush.xpose.msra.mxu0 %v804
        %831 = vmatmul.f32.gmra.mxu0 %v801
        %v832 = vpop.f32.mrf.mxu0
        %v833 = vadd.f32 %v797, %v832
        %834 = vdwg.mxu0
        %v835 = vld [vmem:[#allocation2] sm:$0xff]
        %v836 = vld [vmem:[#allocation3] sm:$0xff]
        %vm837 = vcmask 64512
        %v839 = vsel %vm837, %v833, 0
        %v842 = vsel %vm837, %v835, 0
        %844 = vmatpush.xpose.msra.mxu0 0.0
        %845 = vmatpush.xpose.msra.mxu0 0.0
        %846 = vmatpush.xpose.msra.mxu0 0.0
        %847 = vmatpush.xpose.msra.mxu0 0.0
        %848 = vmatpush.xpose.msra.mxu0 0.0
        %849 = vmatpush.xpose.msra.mxu0 0.0
        %850 = vmatpush.xpose.msra.mxu0 0.0
        %851 = vmatpush.xpose.msra.mxu0 0.0
        %852 = vmatpush.xpose.msra.mxu0 0.0
        %853 = vmatpush.xpose.msra.mxu0 0.0
        %854 = vmatpush.xpose.msra.mxu0 0.0
        %855 = vmatpush.xpose.msra.mxu0 0.0
        %856 = vmatpush.xpose.msra.mxu0 0.0
        %857 = vmatpush.xpose.msra.mxu0 0.0
        %858 = vmatpush.xpose.msra.mxu0 0.0
        %859 = vmatpush.xpose.msra.mxu0 %v842
        %860 = vmatmul.f32.gmra.mxu0 %v839
        %v861 = vpop.f32.mrf.mxu0
        %v862 = vadd.f32 0.0, %v861
        %863 = vdwg.mxu0
        %v864 = vmul.f32 %v862, 0.35355338
        %v865 = vsel %vm837, %v864, -inf
        %866 = vmax.xlane.f32.xlu0 %v865
        %v867 = vpop.xlane.xlu0 %866
        %v868 = vsub.f32 %v864, %v867
        %v869 = vmul.f32 %v868, 1.442695
        %v870 = vpow.pop %v869
        %v871 = vsel %vm837, %v870, 0.0
        %872 = vadd.xlane.f32.xlu0 %v871
        %v873 = vpop.xlane.xlu0 %872
        %v874 = vrcp.pop %v873
        %v875 = vmul.f32 %v873, %v874
        %v876 = vsub.f32 1.0, %v875
        %v877 = vmul.f32 %v874, %v876
        %v878 = vadd.f32 %v874, %v877
        %vm879 = vweird.f32 %v873
        %vm880 = vweird.f32 %v874
        %vm881 = vmor %vm879, %vm880
        %v882 = vsel %vm881, %v874, %v878
        %v883 = vand.u32 2147483647, %v873
        %vm884 = vcmp.eq.f32.partialorder %v883, 8.507059e+37
        %v885 = vand.u32 %v873, 2147483648
        %v886 = vor.u32 1.1754944e-38, %v885
        %v887 = vsel %vm884, %v886, %v882
        %v888 = vmul.f32 %v870, %v887
        %889 = vst.msk [vmem:[%s670] sm:$0xff] %vm837, %v888
        %v891 = vsel %vm837, %v888, 0
        %893 = vmatpush.msra.mxu0 0.0
        %894 = vmatpush.msra.mxu0 0.0
        %895 = vmatpush.msra.mxu0 0.0
        %896 = vmatpush.msra.mxu0 0.0
        %897 = vmatpush.msra.mxu0 0.0
        %898 = vmatpush.msra.mxu0 0.0
        %899 = vmatpush.msra.mxu0 0.0
        %900 = vmatpush.msra.mxu0 0.0
        %901 = vmatpush.msra.mxu0 0.0
        %902 = vmatpush.msra.mxu0 0.0
        %903 = vmatpush.msra.mxu0 0.0
        %904 = vmatpush.msra.mxu0 0.0
        %905 = vmatpush.msra.mxu0 0.0
        %906 = vmatpush.msra.mxu0 0.0
        %907 = vmatpush.msra.mxu0 0.0
        %908 = vmatpush.msra.mxu0 %v836
        %909 = vmatmul.f32.gmra.mxu0 %v891
        %v910 = vpop.f32.mrf.mxu0
        %v911 = vadd.f32 0.0, %v910
        %912 = vdwg.mxu0
        %913 = vrot.lane.b32.xlu0 %v833, 120
        %v914 = vpop.permute.xlu0 %913
        %915 = vrot.lane.b32.xlu0 %v835, 120
        %v916 = vpop.permute.xlu0 %915
        %v917 = vsel %vm837, %v914, 0
        %v919 = vsel %vm837, %v916, 0
        %921 = vmatpush.xpose.msra.mxu0 0.0
        %922 = vmatpush.xpose.msra.mxu0 0.0
        %923 = vmatpush.xpose.msra.mxu0 0.0
        %924 = vmatpush.xpose.msra.mxu0 0.0
        %925 = vmatpush.xpose.msra.mxu0 0.0
        %926 = vmatpush.xpose.msra.mxu0 0.0
        %927 = vmatpush.xpose.msra.mxu0 0.0
        %928 = vmatpush.xpose.msra.mxu0 0.0
        %929 = vmatpush.xpose.msra.mxu0 0.0
        %930 = vmatpush.xpose.msra.mxu0 0.0
        %931 = vmatpush.xpose.msra.mxu0 0.0
        %932 = vmatpush.xpose.msra.mxu0 0.0
        %933 = vmatpush.xpose.msra.mxu0 0.0
        %934 = vmatpush.xpose.msra.mxu0 0.0
        %935 = vmatpush.xpose.msra.mxu0 0.0
        %936 = vmatpush.xpose.msra.mxu0 %v919
        %937 = vmatmul.f32.gmra.mxu0 %v917
        %v938 = vpop.f32.mrf.mxu0
        %v939 = vadd.f32 0.0, %v938
        %940 = vdwg.mxu0
        %v941 = vmul.f32 %v939, 0.35355338
        %v942 = vsel %vm837, %v941, -inf
        %943 = vmax.xlane.f32.xlu0 %v942
        %v944 = vpop.xlane.xlu0 %943
        %v945 = vsub.f32 %v941, %v944
        %v946 = vmul.f32 %v945, 1.442695
        %v947 = vpow.pop %v946
        %v948 = vsel %vm837, %v947, 0.0
        %949 = vadd.xlane.f32.xlu0 %v948
        %v950 = vpop.xlane.xlu0 %949
        %v951 = vrcp.pop %v950
        %v952 = vmul.f32 %v950, %v951
        %v953 = vsub.f32 1.0, %v952
        %v954 = vmul.f32 %v951, %v953
        %v955 = vadd.f32 %v951, %v954
        %vm956 = vweird.f32 %v950
        %vm957 = vweird.f32 %v951
        %vm958 = vmor %vm956, %vm957
        %v959 = vsel %vm958, %v951, %v955
        %v960 = vand.u32 2147483647, %v950
        %vm961 = vcmp.eq.f32.partialorder %v960, 8.507059e+37
        %v962 = vand.u32 %v950, 2147483648
        %v963 = vor.u32 1.1754944e-38, %v962
        %v964 = vsel %vm961, %v963, %v959
        %v965 = vmul.f32 %v947, %v964
        %s966 = scalar_lea.vmem %s670, 8 [#allocation20]
        %967 = vst.msk [vmem:[%s966] sm:$0xff] %vm837, %v965
        %969 = vrot.lane.b32.xlu0 %v836, 120
        %v970 = vpop.permute.xlu0 %969
        %v973 = vsel %vm837, %v965, 0
        %975 = vmatpush.msra.mxu0 0.0
        %976 = vmatpush.msra.mxu0 0.0
        %977 = vmatpush.msra.mxu0 0.0
        %978 = vmatpush.msra.mxu0 0.0
        %979 = vmatpush.msra.mxu0 0.0
        %980 = vmatpush.msra.mxu0 0.0
        %981 = vmatpush.msra.mxu0 0.0
        %982 = vmatpush.msra.mxu0 0.0
        %983 = vmatpush.msra.mxu0 0.0
        %984 = vmatpush.msra.mxu0 0.0
        %985 = vmatpush.msra.mxu0 0.0
        %986 = vmatpush.msra.mxu0 0.0
        %987 = vmatpush.msra.mxu0 0.0
        %988 = vmatpush.msra.mxu0 0.0
        %989 = vmatpush.msra.mxu0 0.0
        %990 = vmatpush.msra.mxu0 %v970
        %991 = vmatmul.f32.gmra.mxu0 %v973
        %v992 = vpop.f32.mrf.mxu0
        %v993 = vadd.f32 0.0, %v992
        %994 = vdwg.mxu0
        %995 = vrot.lane.b32.xlu0 %v833, 112
        %v996 = vpop.permute.xlu0 %995
        %997 = vrot.lane.b32.xlu0 %v835, 112
        %v998 = vpop.permute.xlu0 %997
        %v999 = vsel %vm837, %v996, 0
        %v1001 = vsel %vm837, %v998, 0
        %1003 = vmatpush.xpose.msra.mxu0 0.0
        %1004 = vmatpush.xpose.msra.mxu0 0.0
        %1005 = vmatpush.xpose.msra.mxu0 0.0
        %1006 = vmatpush.xpose.msra.mxu0 0.0
        %1007 = vmatpush.xpose.msra.mxu0 0.0
        %1008 = vmatpush.xpose.msra.mxu0 0.0
        %1009 = vmatpush.xpose.msra.mxu0 0.0
        %1010 = vmatpush.xpose.msra.mxu0 0.0
        %1011 = vmatpush.xpose.msra.mxu0 0.0
        %1012 = vmatpush.xpose.msra.mxu0 0.0
        %1013 = vmatpush.xpose.msra.mxu0 0.0
        %1014 = vmatpush.xpose.msra.mxu0 0.0
        %1015 = vmatpush.xpose.msra.mxu0 0.0
        %1016 = vmatpush.xpose.msra.mxu0 0.0
        %1017 = vmatpush.xpose.msra.mxu0 0.0
        %1018 = vmatpush.xpose.msra.mxu0 %v1001
        %1019 = vmatmul.f32.gmra.mxu0 %v999
        %v1020 = vpop.f32.mrf.mxu0
        %v1021 = vadd.f32 0.0, %v1020
        %1022 = vdwg.mxu0
        %v1023 = vmul.f32 %v1021, 0.35355338
        %v1024 = vsel %vm837, %v1023, -inf
        %1025 = vmax.xlane.f32.xlu0 %v1024
        %v1026 = vpop.xlane.xlu0 %1025
        %v1027 = vsub.f32 %v1023, %v1026
        %v1028 = vmul.f32 %v1027, 1.442695
        %v1029 = vpow.pop %v1028
        %v1030 = vsel %vm837, %v1029, 0.0
        %1031 = vadd.xlane.f32.xlu0 %v1030
        %v1032 = vpop.xlane.xlu0 %1031
        %v1033 = vrcp.pop %v1032
        %v1034 = vmul.f32 %v1032, %v1033
        %v1035 = vsub.f32 1.0, %v1034
        %v1036 = vmul.f32 %v1033, %v1035
        %v1037 = vadd.f32 %v1033, %v1036
        %vm1038 = vweird.f32 %v1032
        %vm1039 = vweird.f32 %v1033
        %vm1040 = vmor %vm1038, %vm1039
        %v1041 = vsel %vm1040, %v1033, %v1037
        %v1042 = vand.u32 2147483647, %v1032
        %vm1043 = vcmp.eq.f32.partialorder %v1042, 8.507059e+37
        %v1044 = vand.u32 %v1032, 2147483648
        %v1045 = vor.u32 1.1754944e-38, %v1044
        %v1046 = vsel %vm1043, %v1045, %v1041
        %v1047 = vmul.f32 %v1029, %v1046
        %s1048 = scalar_lea.vmem %s670, 16 [#allocation20]
        %1049 = vst.msk [vmem:[%s1048] sm:$0xff] %vm837, %v1047
        %1050 = vrot.lane.b32.xlu0 %v836, 112
        %v1051 = vpop.permute.xlu0 %1050
        %v1054 = vsel %vm837, %v1047, 0
        %1056 = vmatpush.msra.mxu0 0.0
        %1057 = vmatpush.msra.mxu0 0.0
        %1058 = vmatpush.msra.mxu0 0.0
        %1059 = vmatpush.msra.mxu0 0.0
        %1060 = vmatpush.msra.mxu0 0.0
        %1061 = vmatpush.msra.mxu0 0.0
        %1062 = vmatpush.msra.mxu0 0.0
        %1063 = vmatpush.msra.mxu0 0.0
        %1064 = vmatpush.msra.mxu0 0.0
        %1065 = vmatpush.msra.mxu0 0.0
        %1066 = vmatpush.msra.mxu0 0.0
        %1067 = vmatpush.msra.mxu0 0.0
        %1068 = vmatpush.msra.mxu0 0.0
        %1069 = vmatpush.msra.mxu0 0.0
        %1070 = vmatpush.msra.mxu0 0.0
        %1071 = vmatpush.msra.mxu0 %v1051
        %1072 = vmatmul.f32.gmra.mxu0 %v1054
        %v1073 = vpop.f32.mrf.mxu0
        %v1074 = vadd.f32 0.0, %v1073
        %1075 = vdwg.mxu0
        %1076 = vrot.lane.b32.xlu0 %v833, 104
        %v1077 = vpop.permute.xlu0 %1076
        %1078 = vrot.lane.b32.xlu0 %v835, 104
        %v1079 = vpop.permute.xlu0 %1078
        %v1080 = vsel %vm837, %v1077, 0
        %v1082 = vsel %vm837, %v1079, 0
        %1084 = vmatpush.xpose.msra.mxu0 0.0
        %1085 = vmatpush.xpose.msra.mxu0 0.0
        %1086 = vmatpush.xpose.msra.mxu0 0.0
        %1087 = vmatpush.xpose.msra.mxu0 0.0
        %1088 = vmatpush.xpose.msra.mxu0 0.0
        %1089 = vmatpush.xpose.msra.mxu0 0.0
        %1090 = vmatpush.xpose.msra.mxu0 0.0
        %1091 = vmatpush.xpose.msra.mxu0 0.0
        %1092 = vmatpush.xpose.msra.mxu0 0.0
        %1093 = vmatpush.xpose.msra.mxu0 0.0
        %1094 = vmatpush.xpose.msra.mxu0 0.0
        %1095 = vmatpush.xpose.msra.mxu0 0.0
        %1096 = vmatpush.xpose.msra.mxu0 0.0
        %1097 = vmatpush.xpose.msra.mxu0 0.0
        %1098 = vmatpush.xpose.msra.mxu0 0.0
        %1099 = vmatpush.xpose.msra.mxu0 %v1082
        %1100 = vmatmul.f32.gmra.mxu0 %v1080
        %v1101 = vpop.f32.mrf.mxu0
        %v1102 = vadd.f32 0.0, %v1101
        %1103 = vdwg.mxu0
        %v1104 = vmul.f32 %v1102, 0.35355338
        %v1105 = vsel %vm837, %v1104, -inf
        %1106 = vmax.xlane.f32.xlu0 %v1105
        %v1107 = vpop.xlane.xlu0 %1106
        %v1108 = vsub.f32 %v1104, %v1107
        %v1109 = vmul.f32 %v1108, 1.442695
        %v1110 = vpow.pop %v1109
        %v1111 = vsel %vm837, %v1110, 0.0
        %1112 = vadd.xlane.f32.xlu0 %v1111
        %v1113 = vpop.xlane.xlu0 %1112
        %v1114 = vrcp.pop %v1113
        %v1115 = vmul.f32 %v1113, %v1114
        %v1116 = vsub.f32 1.0, %v1115
        %v1117 = vmul.f32 %v1114, %v1116
        %v1118 = vadd.f32 %v1114, %v1117
        %vm1119 = vweird.f32 %v1113
        %vm1120 = vweird.f32 %v1114
        %vm1121 = vmor %vm1119, %vm1120
        %v1122 = vsel %vm1121, %v1114, %v1118
        %v1123 = vand.u32 2147483647, %v1113
        %vm1124 = vcmp.eq.f32.partialorder %v1123, 8.507059e+37
        %v1125 = vand.u32 %v1113, 2147483648
        %v1126 = vor.u32 1.1754944e-38, %v1125
        %v1127 = vsel %vm1124, %v1126, %v1122
        %v1128 = vmul.f32 %v1110, %v1127
        %s1129 = scalar_lea.vmem %s670, 24 [#allocation20]
        %1130 = vst.msk [vmem:[%s1129] sm:$0xff] %vm837, %v1128
        %1131 = vrot.lane.b32.xlu0 %v836, 104
        %v1132 = vpop.permute.xlu0 %1131
        %v1135 = vsel %vm837, %v1128, 0
        %1137 = vmatpush.msra.mxu0 0.0
        %1138 = vmatpush.msra.mxu0 0.0
        %1139 = vmatpush.msra.mxu0 0.0
        %1140 = vmatpush.msra.mxu0 0.0
        %1141 = vmatpush.msra.mxu0 0.0
        %1142 = vmatpush.msra.mxu0 0.0
        %1143 = vmatpush.msra.mxu0 0.0
        %1144 = vmatpush.msra.mxu0 0.0
        %1145 = vmatpush.msra.mxu0 0.0
        %1146 = vmatpush.msra.mxu0 0.0
        %1147 = vmatpush.msra.mxu0 0.0
        %1148 = vmatpush.msra.mxu0 0.0
        %1149 = vmatpush.msra.mxu0 0.0
        %1150 = vmatpush.msra.mxu0 0.0
        %1151 = vmatpush.msra.mxu0 0.0
        %1152 = vmatpush.msra.mxu0 %v1132
        %1153 = vmatmul.f32.gmra.mxu0 %v1135
        %v1154 = vpop.f32.mrf.mxu0
        %v1155 = vadd.f32 0.0, %v1154
        %1156 = vdwg.mxu0
        %1158 = vrot.lane.b32.xlu0 %v993, 8
        %v1159 = vpop.permute.xlu0 %1158
        %1162 = vrot.lane.b32.xlu0 %v1074, 16
        %v1163 = vpop.permute.xlu0 %1162
        %1166 = vrot.lane.b32.xlu0 %v1155, 24
        %v1167 = vpop.permute.xlu0 %1166
        %v1169 = vsel %vm837, %v911, %v1159
        %vm1170 = vcmask 130048
        %v1171 = vsel %vm1170, %v1169, %v1163
        %vm1172 = vcmask 195584
        %v1173 = vsel %vm1172, %v1171, %v1167
        %v1174 = vld [vmem:[#allocation17] sm:$0xff]
        %v1175 = vld [vmem:[#allocation17 + $0x8] sm:$0xff]
        %v1176 = vld [vmem:[#allocation17 + $0x10] sm:$0xff]
        %v1177 = vld [vmem:[#allocation17 + $0x18] sm:$0xff]
        %v1178 = vld [vmem:[%s11] sm:$0x1]
        %v1180 = vperm.slane %v1178, 0
        %v1183 = vsel %vm799, %v1173, 0
        %v1186 = vsel %vm799, %v1174, 0
        %v1189 = vsel %vm799, %v1175, 0
        %v1192 = vsel %vm799, %v1176, 0
        %v1195 = vsel %vm799, %v1177, 0
        %1197 = vmatpush.xpose.msra.mxu0 0.0
        %1198 = vmatpush.xpose.msra.mxu0 0.0
        %1199 = vmatpush.xpose.msra.mxu0 0.0
        %1200 = vmatpush.xpose.msra.mxu0 0.0
        %1201 = vmatpush.xpose.msra.mxu0 0.0
        %1202 = vmatpush.xpose.msra.mxu0 0.0
        %1203 = vmatpush.xpose.msra.mxu0 0.0
        %1204 = vmatpush.xpose.msra.mxu0 0.0
        %1205 = vmatpush.xpose.msra.mxu0 0.0
        %1206 = vmatpush.xpose.msra.mxu0 0.0
        %1207 = vmatpush.xpose.msra.mxu0 0.0
        %1208 = vmatpush.xpose.msra.mxu0 0.0
        %1209 = vmatpush.xpose.msra.mxu0 %v1195
        %1210 = vmatpush.xpose.msra.mxu0 %v1192
        %1211 = vmatpush.xpose.msra.mxu0 %v1189
        %1212 = vmatpush.xpose.msra.mxu0 %v1186
        %1213 = vmatmul.f32.gmra.mxu0 %v1183
        %v1214 = vpop.f32.mrf.mxu0
        %v1215 = vadd.f32 %v1180, %v1214
        %1216 = vdwg.mxu0
        %1217 = vst.msk [vmem:[%s663] sm:$0xff] %vm799, %v1215
        %s1218 = sand.u32 %s338, 1
        %s1219 = scalar_lea.sflag [#allocation7], %s1218
        %s1220 = sand.u32 %s338, 1
        %s1221 = smul.addr %s1220, 8
        %s1222 = scalar_lea.vmem [#allocation19], %s1221
        %s1223 = sand.u32 %s366, 1
        %s1224 = scalar_lea.sflag [#allocation21], %s1223
        %s1225 = sand.u32 %s366, 1
        %s1226 = smul.addr %s1225, 32
        %s1227 = scalar_lea.vmem [#allocation20], %s1226
        // Predicated region
        $region105: #{tpu_custom_call.1} parent=67 // pred_check
          %p1228 = pneg %p348
        $region106: #{tpu_custom_call.1} parent=67 // pred_check_branch
          %1230 = sbr.rel (%p1228) target = $region108
        $region107: #{tpu_custom_call.1} parent=67 // pred_region
          %1232 = vsyncadd %s1219, 0
          %s1233 = sadd.s32 %s47, %s46
          %s1234 = smul.addr %s1233, 8
          %s1235 = scalar_lea.hbm %s12, %s1234
          %s1237 = sshll.u32 %s1222, 4
          %s1238 = int_to_ptr.vmem [resolvable:$true] %s1237
          %s1239 = sshll.u32 %s1235, 4
          %s1240 = int_to_ptr.hbm [resolvable:$true] %s1239
          %1242 = dma.vmem_to_hbm [thread:$0]  %s1238, 128, %s1240, %s1219
        $region108: #{tpu_custom_call.1} parent=67 // pred_fallthru
          _
        // Predicated region
        $region109: #{tpu_custom_call.1} parent=67 // pred_check
          %p1243 = pneg %p376
        $region110: #{tpu_custom_call.1} parent=67 // pred_check_branch
          %1245 = sbr.rel (%p1243) target = $region112
        $region111: #{tpu_custom_call.1} parent=67 // pred_region
          %1247 = vsyncadd %s1224, 0
          %s1248 = smul.addr %s46, 4
          %s1249 = sadd.s32 %s47, %s1248
          %s1250 = smul.addr %s1249, 8
          %s1251 = scalar_lea.hbm %s13, %s1250
          %s1252 = sshll.u32 %s1227, 4
          %s1253 = int_to_ptr.vmem [resolvable:$true] %s1252
          %s1254 = sshll.u32 %s1251, 4
          %s1255 = int_to_ptr.hbm [resolvable:$true] %s1254
          %1260 = dma.vmem_to_hbm [thread:$0]  %s1253, 512, %s1255, %s1224, 128, 128, 8
        $region112: #{tpu_custom_call.1} parent=67 // pred_fallthru
          _
      $region68: #{tpu_custom_call.1} parent=5 // pred_fallthru
        _
      %p1261 = scmp.le.s32.totalorder 2, %s37
      // Predicated region
      $region113: #{tpu_custom_call.1} parent=5 // pred_check
        %p1262 = pneg %p1261
      $region114: #{tpu_custom_call.1} parent=5 // pred_check_branch
        %1264 = sbr.rel (%p1262) target = $region116
      $region115: #{tpu_custom_call.1} parent=5 // pred_region
        %s1265 = ssub.s32 %s37, 2
        // Predicated region
        $region117: #{tpu_custom_call.1} parent=115 // pred_check
          %p1266 = pneg %p354
        $region118: #{tpu_custom_call.1} parent=115 // pred_check_branch
          %1268 = sbr.rel (%p1266) target = $region120
        $region119: #{tpu_custom_call.1} parent=115 // pred_region
          %s1269 = sand.u32 %s339, 1
          %s1270 = scalar_lea.sflag [#allocation7], %s1269
          %s1271 = sand.u32 %s339, 1
          %s1272 = smul.addr %s1271, 8
          %s1273 = scalar_lea.vmem [#allocation19], %s1272
          %1275 = dma.done %s1270, 128
        $region120: #{tpu_custom_call.1} parent=115 // pred_fallthru
          _
        // Predicated region
        $region121: #{tpu_custom_call.1} parent=115 // pred_check
          %p1276 = pneg %p382
        $region122: #{tpu_custom_call.1} parent=115 // pred_check_branch
          %1278 = sbr.rel (%p1276) target = $region124
        $region123: #{tpu_custom_call.1} parent=115 // pred_region
          %s1279 = sand.u32 %s367, 1
          %s1280 = scalar_lea.sflag [#allocation21], %s1279
          %s1281 = sand.u32 %s367, 1
          %s1282 = smul.addr %s1281, 32
          %s1283 = scalar_lea.vmem [#allocation20], %s1282
          %1285 = dma.done %s1280, 512
        $region124: #{tpu_custom_call.1} parent=115 // pred_fallthru
          _
      $region116: #{tpu_custom_call.1} parent=5 // pred_fallthru
        _
    $region6: #{tpu_custom_call.1} parent=1 // loop_footer
      %s41 = sadd.s32 1, %s37
    $region7: #{tpu_custom_call.1} parent=1 // loop_footer_branch
      %36 = sbr.rel target = $region3
    $region8: #{tpu_custom_call.1} parent=1 // loop_exit
      _
    %1286 = vsyncpa [#allocation6], 1
    %s1287 = scalar_lea.sflag [#allocation6], 1
    %1288 = vsyncpa %s1287, 1
    %1289 = vsyncpa [#allocation9], 1
    %s1290 = scalar_lea.sflag [#allocation9], 1
    %1291 = vsyncpa %s1290, 1
    %1292 = vsyncpa [#allocation12], 1
    %s1293 = scalar_lea.sflag [#allocation12], 1
    %1294 = vsyncpa %s1293, 1
    %1295 = vsyncpa [#allocation15], 1
    %1296 = vsyncpa [#allocation18], 1
    %1297 = vsyncpa [#allocation7], 1
    %s1298 = scalar_lea.sflag [#allocation7], 1
    %1299 = vsyncpa %s1298, 1
    %1300 = vsyncpa [#allocation21], 1
    %s1301 = scalar_lea.sflag [#allocation21], 1
    %1302 = vsyncpa %s1301, 1

</llo_original>
